<compile_context>
chip_gen: v7x
topology: tpu7x:2x2x1
jax: 0.10.0
libtpu: 0.0.40
codegen_flags: <defaults>
</compile_context>

<pallas_src>
import functools

import jax
import jax.numpy as jnp
from jax.experimental import pallas as pl
from jax.experimental.pallas import tpu as pltpu


def _dsc_kernel(x_ref, wdw_ref, wt_ref, bt_ref, o_ref):
    """One (batch, row-strip) grid step.

    x_ref  : (H, W, Cin)        full-height NHWC image for this batch element
                                (batch dim squeezed, resident across strips).
    wdw_ref: (9, Cin)           depthwise taps, tap index = dy*3 + dx.
    wt_ref : (Cout, Cin)        pointwise weight with BN scale folded in
                                (PyTorch orientation, f32 or bf16).
    bt_ref : (Cout, 1)          folded BN shift.
    o_ref  : (Cout, TILE_H*W)   lane-dense NCHW-flattened output strip.
    """
    H, W, Cin = x_ref.shape
    Cout, tile_hw = o_ref.shape
    tile_h = tile_hw // W

    s = pl.program_id(1)
    row0 = pl.multiple_of(s * tile_h, tile_h)         # first output row of strip

    # ---- strip + 1-row halos (borders -> zeros, interior halos from the -----
    # ---- neighbouring strip's rows of the resident full-height block) -------
    mid = x_ref[pl.ds(row0, tile_h), :, :]                                 # rows r
    top = x_ref[pl.ds(jnp.maximum(row0 - 1, 0), 1), :, :]
    top = jnp.where(row0 > 0, top, 0.0)                                    # row r-1
    bot = x_ref[pl.ds(jnp.minimum(row0 + tile_h, H - 1), 1), :, :]
    bot = jnp.where(row0 + tile_h < H, bot, 0.0)                           # row r+1
    xs = jnp.concatenate([top, mid, bot], axis=0).astype(jnp.float32)      # (tile_h+2, W, Cin)

    # ---- two width-shifted copies per strip (padding=1 at the W borders) ----
    zcol = jnp.zeros((tile_h + 2, 1, Cin), jnp.float32)
    xs_l = jnp.concatenate([zcol, xs[:, :W - 1, :]], axis=1)   # x[.., w-1, ..]
    xs_r = jnp.concatenate([xs[:, 1:, :], zcol], axis=1)       # x[.., w+1, ..]
    cols = (xs_l, xs, xs_r)                                    # indexed by dx

    # ---- depthwise 3x3: 9 VPU MACs, every tap a free leading-axis slice -----
    acc = jnp.zeros((tile_h, W, Cin), jnp.float32)
    for dy in range(3):
        for dx in range(3):
            tap = cols[dx][dy:dy + tile_h]                               # (tile_h, W, Cin)
            w = wdw_ref[dy * 3 + dx:dy * 3 + dx + 1, :].astype(jnp.float32)  # (1, Cin)
            acc = acc + tap * w

    # ---- pointwise 1x1 + folded BN + ReLU, emitted as (Cout, TILE_H*W) ------
    d = acc.reshape(tile_h * W, Cin)            # leading-dim collapse (free for W % 8 == 0)
    wt = wt_ref[...]
    yt = jax.lax.dot_general(
        wt, d.astype(wt.dtype),
        dimension_numbers=(((1,), (1,)), ((), ())),           # (Cout,Cin) x (M,Cin)^T
        precision=jax.lax.Precision.HIGHEST,
        preferred_element_type=jnp.float32)                   # (Cout, tile_h*W)
    yt = jnp.maximum(yt + bt_ref[...], 0.0)
    o_ref[...] = yt.astype(o_ref.dtype)


def _pick_tile_h(H, W):
    """Output row-strip height: divides H, multiple of 8, TILE_H*W lane-aligned,
    >= 2 strips when possible; falls back to the full image height."""
    cands = [t for t in (128, 64, 32, 16, 8) if H % t == 0 and (t * W) % 128 == 0]
    for t in cands:
        if H // t >= 2:
            return t
    return cands[0] if cands else H


def depth_separable_conv(x_nchw, params, *, eps=1e-5, mxu_dtype=jnp.float32):
    """x_nchw: (B, Cin, H, W). Returns (B, Cout, H, W) — matches the PyTorch module."""
    B, Cin, H, W = x_nchw.shape
    w_dw = params["w_dw"]                    # (Cin, 1, 3, 3)    depthwise (PyTorch layout)
    w_pw = params["w_pw"]                    # (Cout, Cin, 1, 1) pointwise
    gamma, beta = params["gamma"], params["beta"]
    mean, var = params["mean"], params["var"]
    Cout = w_pw.shape[0]

    tile_h = _pick_tile_h(H, W)
    n_strips = H // tile_h

    # NCHW -> NHWC once on the way in (in an NHWC network this transpose
    # disappears).  The kernel writes NCHW-flattened output directly, so there
    # is no transpose on the way out.
    x_nhwc = jnp.transpose(x_nchw, (0, 2, 3, 1))

    # Depthwise taps (Cin,1,3,3) -> (9, Cin), tap index = dy*3 + dx.
    wdw = jnp.transpose(w_dw[:, 0, :, :], (1, 2, 0)).reshape(9, Cin)

    # Fold eval-mode BatchNorm into the (bias-free) pointwise conv.
    scale = gamma * jax.lax.rsqrt(var + eps)                       # (Cout,)
    wt = (w_pw[:, :, 0, 0] * scale[:, None]).astype(mxu_dtype)     # (Cout, Cin)
    bt = (beta - mean * scale).reshape(Cout, 1).astype(jnp.float32)

    # VMEM budget (double-buffered blocks + in-kernel working set), explicit so
    # the same kernel stays inside v7x's 64 MiB VMEM.
    b4 = 4
    in_block = H * W * Cin * b4
    out_block = Cout * tile_h * W * b4
    scratch = (4 * (tile_h + 2) * W * Cin + 2 * tile_h * W * (Cin + Cout)) * b4
    weights = (9 * Cin + Cout * Cin + Cout) * b4
    vmem_limit = int(min(max(2 * (2 * in_block + 2 * out_block + scratch + weights),
                             8 * 1024 * 1024),
                         64 * 1024 * 1024))

    y_flat = pl.pallas_call(
        _dsc_kernel,
        out_shape=jax.ShapeDtypeStruct((B, Cout, H * W), x_nchw.dtype),
        grid=(B, n_strips),
        in_specs=[
            # Full-height image, resident across the (inner) strip axis: the HBM
            # read happens exactly once per batch element.
            pl.BlockSpec((None, H, W, Cin), lambda b, s: (b, 0, 0, 0)),
            pl.BlockSpec((9, Cin), lambda b, s: (0, 0)),
            pl.BlockSpec((Cout, Cin), lambda b, s: (0, 0)),
            pl.BlockSpec((Cout, 1), lambda b, s: (0, 0)),
        ],
        # Lane-dense NCHW-flattened output strips: last block dim = TILE_H*W.
        out_specs=pl.BlockSpec((None, Cout, tile_h * W), lambda b, s: (b, 0, s)),
        compiler_params=pltpu.CompilerParams(
            dimension_semantics=("parallel", "parallel"),
            vmem_limit_bytes=vmem_limit),
    )(x_nhwc, wdw, wt, bt)

    return y_flat.reshape(B, Cout, H, W)


def _init_params(key, Cin, Cout):
    """Deterministic synthetic weights matching the PyTorch module's layouts."""
    ks = jax.random.split(key, 6)
    s = 0.1
    return {
        "w_dw": s * jax.random.normal(ks[0], (Cin, 1, 3, 3), jnp.float32),
        "w_pw": s * jax.random.normal(ks[1], (Cout, Cin, 1, 1), jnp.float32),
        "gamma": 1.0 + s * jax.random.normal(ks[2], (Cout,), jnp.float32),
        "beta": s * jax.random.normal(ks[3], (Cout,), jnp.float32),
        "mean": s * jax.random.normal(ks[4], (Cout,), jnp.float32),
        "var": 0.5 + jax.random.uniform(ks[5], (Cout,), jnp.float32),
    }


def _reference(x, params, eps=1e-5):
    """Pure-JAX reference mirroring the PyTorch forward (eval-mode BN)."""
    prec = jax.lax.Precision.HIGHEST
    d = jax.lax.conv_general_dilated(
        x, params["w_dw"], window_strides=(1, 1), padding=((1, 1), (1, 1)),
        dimension_numbers=("NCHW", "OIHW", "NCHW"),
        feature_group_count=x.shape[1], precision=prec)
    p = jax.lax.conv_general_dilated(
        d, params["w_pw"], window_strides=(1, 1), padding="VALID",
        dimension_numbers=("NCHW", "OIHW", "NCHW"), precision=prec)
    scale = params["gamma"] / jnp.sqrt(params["var"] + eps)
    shift = params["beta"] - params["mean"] * scale
    y = p * scale[None, :, None, None] + shift[None, :, None, None]
    return jnp.maximum(y, 0.0)


if __name__ == "__main__":
    key = jax.random.PRNGKey(0)
    kx, kp = jax.random.split(key)

    B, Cin, Cout, H, W = 2, 16, 32, 16, 16
    x = jax.random.normal(kx, (B, Cin, H, W), jnp.float32)
    params = _init_params(kp, Cin, Cout)

    # f32 MXU feed: tight check against the f32 reference.
    y = jax.block_until_ready(jax.jit(depth_separable_conv)(x, params))
    y_ref = _reference(x, params)
    assert y.shape == (B, Cout, H, W)
    err = float(jnp.max(jnp.abs(y - y_ref)))
    assert jnp.allclose(y, y_ref, atol=1e-4, rtol=1e-4), err

    # bf16 MXU feed (v6e/v7x fast path, f32 accumulation): looser tolerance.
    f_bf16 = jax.jit(functools.partial(depth_separable_conv, mxu_dtype=jnp.bfloat16))
    y16 = jax.block_until_ready(f_bf16(x, params))
    err16 = float(jnp.max(jnp.abs(y16 - y_ref)))
    assert jnp.allclose(y16, y_ref, atol=2e-2, rtol=2e-2), err16

    print("KERNEL_OK")
</pallas_src>

<mosaic_0001>
module attributes {stable_mosaic.version = 11 : i64} {
  func.func @_dsc_kernel(%arg0: i32, %arg1: i32, %arg2: memref<1x16x16x16xf32, #tpu.memory_space<vmem>>, %arg3: memref<9x16xf32, #tpu.memory_space<vmem>>, %arg4: memref<32x16xf32, #tpu.memory_space<vmem>>, %arg5: memref<32x1xf32, #tpu.memory_space<vmem>>, %arg6: memref<1x32x128xf32, #tpu.memory_space<vmem>>) attributes {dimension_semantics = [#tpu.dimension_semantics<parallel>, #tpu.dimension_semantics<parallel>], iteration_bounds = array<i64: 2, 2>, scalar_prefetch = 0 : i64, scratch_operands = 0 : i64, tpu.core_type = #tpu.core_type<tc>, window_params = [{transform_indices = @transform_0, window_bounds = array<i64: 1, 16, 16, 16>}, {pipeline_mode = #tpu.pipeline_mode<synchronous>, transform_indices = @transform_1, window_bounds = array<i64: 9, 16>}, {pipeline_mode = #tpu.pipeline_mode<synchronous>, transform_indices = @transform_2, window_bounds = array<i64: 32, 16>}, {pipeline_mode = #tpu.pipeline_mode<synchronous>, transform_indices = @transform_3, window_bounds = array<i64: 32, 1>}, {transform_indices = @transform_4, window_bounds = array<i64: 1, 32, 128>}]} {
    %c8_i32 = arith.constant 8 : i32
    %0 = arith.muli %arg1, %c8_i32 : i32
    %1 = tpu.assume_multiple %0, 8 : i32
    %c0 = arith.constant 0 : index
    %2 = arith.index_cast %1 : i32 to index
    %c0_0 = arith.constant 0 : index
    %c0_1 = arith.constant 0 : index
    %3 = vector.load %arg2[%c0, %2, %c0_0, %c0_1] : memref<1x16x16x16xf32, #tpu.memory_space<vmem>>, vector<1x8x16x16xf32>
    %4 = vector.shape_cast %3 : vector<1x8x16x16xf32> to vector<8x16x16xf32>
    %c1_i32 = arith.constant 1 : i32
    %5 = arith.subi %1, %c1_i32 : i32
    %c0_i32 = arith.constant 0 : i32
    %6 = arith.maxsi %5, %c0_i32 : i32
    %c0_2 = arith.constant 0 : index
    %7 = arith.index_cast %6 : i32 to index
    %c0_3 = arith.constant 0 : index
    %c0_4 = arith.constant 0 : index
    %8 = vector.load %arg2[%c0_2, %7, %c0_3, %c0_4] : memref<1x16x16x16xf32, #tpu.memory_space<vmem>>, vector<1x1x16x16xf32>
    %9 = vector.shape_cast %8 : vector<1x1x16x16xf32> to vector<1x16x16xf32>
    %c0_i32_5 = arith.constant 0 : i32
    %10 = arith.cmpi sgt, %1, %c0_i32_5 : i32
    %cst = arith.constant 0.000000e+00 : f32
    %11 = vector.broadcast %cst : f32 to vector<1x16x16xf32>
    %12 = arith.select %10, %9, %11 : vector<1x16x16xf32>
    %c8_i32_6 = arith.constant 8 : i32
    %13 = arith.addi %1, %c8_i32_6 : i32
    %c15_i32 = arith.constant 15 : i32
    %14 = arith.minsi %13, %c15_i32 : i32
    %c0_7 = arith.constant 0 : index
    %15 = arith.index_cast %14 : i32 to index
    %c0_8 = arith.constant 0 : index
    %c0_9 = arith.constant 0 : index
    %16 = vector.load %arg2[%c0_7, %15, %c0_8, %c0_9] : memref<1x16x16x16xf32, #tpu.memory_space<vmem>>, vector<1x1x16x16xf32>
    %17 = vector.shape_cast %16 : vector<1x1x16x16xf32> to vector<1x16x16xf32>
    %c8_i32_10 = arith.constant 8 : i32
    %18 = arith.addi %1, %c8_i32_10 : i32
    %c16_i32 = arith.constant 16 : i32
    %19 = arith.cmpi slt, %18, %c16_i32 : i32
    %cst_11 = arith.constant 0.000000e+00 : f32
    %20 = vector.broadcast %cst_11 : f32 to vector<1x16x16xf32>
    %21 = arith.select %19, %17, %20 : vector<1x16x16xf32>
    %22 = tpu.concatenate %12, %4, %21 in 0 : vector<1x16x16xf32>, vector<8x16x16xf32>, vector<1x16x16xf32> -> vector<10x16x16xf32>
    %cst_12 = arith.constant 0.000000e+00 : f32
    %23 = vector.broadcast %cst_12 : f32 to vector<10x1x16xf32>
    %24 = vector.extract_strided_slice %22 {offsets = [0, 0, 0], sizes = [10, 15, 16], strides = [1, 1, 1]} : vector<10x16x16xf32> to vector<10x15x16xf32>
    %25 = tpu.concatenate %23, %24 in 1 : vector<10x1x16xf32>, vector<10x15x16xf32> -> vector<10x16x16xf32>
    %26 = vector.extract_strided_slice %22 {offsets = [0, 1, 0], sizes = [10, 15, 16], strides = [1, 1, 1]} : vector<10x16x16xf32> to vector<10x15x16xf32>
    %27 = tpu.concatenate %26, %23 in 1 : vector<10x15x16xf32>, vector<10x1x16xf32> -> vector<10x16x16xf32>
    %cst_13 = arith.constant 0.000000e+00 : f32
    %28 = vector.broadcast %cst_13 : f32 to vector<8x16x16xf32>
    %29 = vector.extract_strided_slice %25 {offsets = [0, 0, 0], sizes = [8, 16, 16], strides = [1, 1, 1]} : vector<10x16x16xf32> to vector<8x16x16xf32>
    %c0_14 = arith.constant 0 : index
    %c0_15 = arith.constant 0 : index
    %30 = vector.load %arg3[%c0_14, %c0_15] : memref<9x16xf32, #tpu.memory_space<vmem>>, vector<1x16xf32>
    %31 = vector.shape_cast %30 : vector<1x16xf32> to vector<1x1x16xf32>
    %32 = vector.broadcast %31 : vector<1x1x16xf32> to vector<8x16x16xf32>
    %33 = arith.mulf %29, %32 : vector<8x16x16xf32>
    %34 = arith.addf %28, %33 : vector<8x16x16xf32>
    %35 = vector.extract_strided_slice %22 {offsets = [0, 0, 0], sizes = [8, 16, 16], strides = [1, 1, 1]} : vector<10x16x16xf32> to vector<8x16x16xf32>
    %c1 = arith.constant 1 : index
    %c0_16 = arith.constant 0 : index
    %36 = vector.load %arg3[%c1, %c0_16] : memref<9x16xf32, #tpu.memory_space<vmem>>, vector<1x16xf32>
    %37 = vector.shape_cast %36 : vector<1x16xf32> to vector<1x1x16xf32>
    %38 = vector.broadcast %37 : vector<1x1x16xf32> to vector<8x16x16xf32>
    %39 = arith.mulf %35, %38 : vector<8x16x16xf32>
    %40 = arith.addf %34, %39 : vector<8x16x16xf32>
    %41 = vector.extract_strided_slice %27 {offsets = [0, 0, 0], sizes = [8, 16, 16], strides = [1, 1, 1]} : vector<10x16x16xf32> to vector<8x16x16xf32>
    %c2 = arith.constant 2 : index
    %c0_17 = arith.constant 0 : index
    %42 = vector.load %arg3[%c2, %c0_17] : memref<9x16xf32, #tpu.memory_space<vmem>>, vector<1x16xf32>
    %43 = vector.shape_cast %42 : vector<1x16xf32> to vector<1x1x16xf32>
    %44 = vector.broadcast %43 : vector<1x1x16xf32> to vector<8x16x16xf32>
    %45 = arith.mulf %41, %44 : vector<8x16x16xf32>
    %46 = arith.addf %40, %45 : vector<8x16x16xf32>
    %47 = vector.extract_strided_slice %25 {offsets = [1, 0, 0], sizes = [8, 16, 16], strides = [1, 1, 1]} : vector<10x16x16xf32> to vector<8x16x16xf32>
    %c3 = arith.constant 3 : index
    %c0_18 = arith.constant 0 : index
    %48 = vector.load %arg3[%c3, %c0_18] : memref<9x16xf32, #tpu.memory_space<vmem>>, vector<1x16xf32>
    %49 = vector.shape_cast %48 : vector<1x16xf32> to vector<1x1x16xf32>
    %50 = vector.broadcast %49 : vector<1x1x16xf32> to vector<8x16x16xf32>
    %51 = arith.mulf %47, %50 : vector<8x16x16xf32>
    %52 = arith.addf %46, %51 : vector<8x16x16xf32>
    %53 = vector.extract_strided_slice %22 {offsets = [1, 0, 0], sizes = [8, 16, 16], strides = [1, 1, 1]} : vector<10x16x16xf32> to vector<8x16x16xf32>
    %c4 = arith.constant 4 : index
    %c0_19 = arith.constant 0 : index
    %54 = vector.load %arg3[%c4, %c0_19] : memref<9x16xf32, #tpu.memory_space<vmem>>, vector<1x16xf32>
    %55 = vector.shape_cast %54 : vector<1x16xf32> to vector<1x1x16xf32>
    %56 = vector.broadcast %55 : vector<1x1x16xf32> to vector<8x16x16xf32>
    %57 = arith.mulf %53, %56 : vector<8x16x16xf32>
    %58 = arith.addf %52, %57 : vector<8x16x16xf32>
    %59 = vector.extract_strided_slice %27 {offsets = [1, 0, 0], sizes = [8, 16, 16], strides = [1, 1, 1]} : vector<10x16x16xf32> to vector<8x16x16xf32>
    %c5 = arith.constant 5 : index
    %c0_20 = arith.constant 0 : index
    %60 = vector.load %arg3[%c5, %c0_20] : memref<9x16xf32, #tpu.memory_space<vmem>>, vector<1x16xf32>
    %61 = vector.shape_cast %60 : vector<1x16xf32> to vector<1x1x16xf32>
    %62 = vector.broadcast %61 : vector<1x1x16xf32> to vector<8x16x16xf32>
    %63 = arith.mulf %59, %62 : vector<8x16x16xf32>
    %64 = arith.addf %58, %63 : vector<8x16x16xf32>
    %65 = vector.extract_strided_slice %25 {offsets = [2, 0, 0], sizes = [8, 16, 16], strides = [1, 1, 1]} : vector<10x16x16xf32> to vector<8x16x16xf32>
    %c6 = arith.constant 6 : index
    %c0_21 = arith.constant 0 : index
    %66 = vector.load %arg3[%c6, %c0_21] : memref<9x16xf32, #tpu.memory_space<vmem>>, vector<1x16xf32>
    %67 = vector.shape_cast %66 : vector<1x16xf32> to vector<1x1x16xf32>
    %68 = vector.broadcast %67 : vector<1x1x16xf32> to vector<8x16x16xf32>
    %69 = arith.mulf %65, %68 : vector<8x16x16xf32>
    %70 = arith.addf %64, %69 : vector<8x16x16xf32>
    %71 = vector.extract_strided_slice %22 {offsets = [2, 0, 0], sizes = [8, 16, 16], strides = [1, 1, 1]} : vector<10x16x16xf32> to vector<8x16x16xf32>
    %c7 = arith.constant 7 : index
    %c0_22 = arith.constant 0 : index
    %72 = vector.load %arg3[%c7, %c0_22] : memref<9x16xf32, #tpu.memory_space<vmem>>, vector<1x16xf32>
    %73 = vector.shape_cast %72 : vector<1x16xf32> to vector<1x1x16xf32>
    %74 = vector.broadcast %73 : vector<1x1x16xf32> to vector<8x16x16xf32>
    %75 = arith.mulf %71, %74 : vector<8x16x16xf32>
    %76 = arith.addf %70, %75 : vector<8x16x16xf32>
    %77 = vector.extract_strided_slice %27 {offsets = [2, 0, 0], sizes = [8, 16, 16], strides = [1, 1, 1]} : vector<10x16x16xf32> to vector<8x16x16xf32>
    %c8 = arith.constant 8 : index
    %c0_23 = arith.constant 0 : index
    %78 = vector.load %arg3[%c8, %c0_23] : memref<9x16xf32, #tpu.memory_space<vmem>>, vector<1x16xf32>
    %79 = vector.shape_cast %78 : vector<1x16xf32> to vector<1x1x16xf32>
    %80 = vector.broadcast %79 : vector<1x1x16xf32> to vector<8x16x16xf32>
    %81 = arith.mulf %77, %80 : vector<8x16x16xf32>
    %82 = arith.addf %76, %81 : vector<8x16x16xf32>
    %83 = vector.shape_cast %82 : vector<8x16x16xf32> to vector<128x16xf32>
    %c0_24 = arith.constant 0 : index
    %c0_25 = arith.constant 0 : index
    %84 = vector.load %arg4[%c0_24, %c0_25] : memref<32x16xf32, #tpu.memory_space<vmem>>, vector<32x16xf32>
    %cst_26 = arith.constant dense<0.000000e+00> : vector<32x128xf32>
    %85 = tpu.matmul %84, %83, %cst_26 {dimension_numbers = #tpu.dot_dimension_numbers<[1], [1], [0], [0], [0, 0, 1, 0], [], []>, precision = #tpu.contract_precision<fp32>} : vector<32x16xf32>, vector<128x16xf32>, vector<32x128xf32> -> vector<32x128xf32>
    %c0_27 = arith.constant 0 : index
    %c0_28 = arith.constant 0 : index
    %86 = vector.load %arg5[%c0_27, %c0_28] : memref<32x1xf32, #tpu.memory_space<vmem>>, vector<32x1xf32>
    %87 = vector.broadcast %86 : vector<32x1xf32> to vector<32x128xf32>
    %88 = arith.addf %85, %87 : vector<32x128xf32>
    %cst_29 = arith.constant 0.000000e+00 : f32
    %89 = vector.broadcast %cst_29 : f32 to vector<32x128xf32>
    %90 = arith.maximumf %88, %89 : vector<32x128xf32>
    %c0_30 = arith.constant 0 : index
    %c0_31 = arith.constant 0 : index
    %c0_32 = arith.constant 0 : index
    %91 = vector.load %arg6[%c0_30, %c0_31, %c0_32] : memref<1x32x128xf32, #tpu.memory_space<vmem>>, vector<1x32x128xf32>
    %92 = vector.shape_cast %91 : vector<1x32x128xf32> to vector<32x128xf32>
    %93 = vector.shape_cast %90 : vector<32x128xf32> to vector<1x32x128xf32>
    tpu.vector_store %arg6[%c0_30, %c0_31, %c0_32], %93 {strides = array<i32>} : memref<1x32x128xf32, #tpu.memory_space<vmem>>, vector<1x32x128xf32>,
    return
  }
  func.func @transform_0(%arg0: i32, %arg1: i32) -> (i32, i32, i32, i32) {
    %c0_i32 = arith.constant 0 : i32
    %c0_i32_0 = arith.constant 0 : i32
    %c0_i32_1 = arith.constant 0 : i32
    %c0_i32_2 = arith.constant 0 : i32
    return %arg0, %c0_i32, %c0_i32_0, %c0_i32_1 : i32, i32, i32, i32
  }
  func.func @transform_1(%arg0: i32, %arg1: i32) -> (i32, i32) {
    %c0_i32 = arith.constant 0 : i32
    %c0_i32_0 = arith.constant 0 : i32
    %c0_i32_1 = arith.constant 0 : i32
    return %c0_i32, %c0_i32_0 : i32, i32
  }
  func.func @transform_2(%arg0: i32, %arg1: i32) -> (i32, i32) {
    %c0_i32 = arith.constant 0 : i32
    %c0_i32_0 = arith.constant 0 : i32
    %c0_i32_1 = arith.constant 0 : i32
    return %c0_i32, %c0_i32_0 : i32, i32
  }
  func.func @transform_3(%arg0: i32, %arg1: i32) -> (i32, i32) {
    %c0_i32 = arith.constant 0 : i32
    %c0_i32_0 = arith.constant 0 : i32
    %c0_i32_1 = arith.constant 0 : i32
    return %c0_i32, %c0_i32_0 : i32, i32
  }
  func.func @transform_4(%arg0: i32, %arg1: i32) -> (i32, i32, i32) {
    %c0_i32 = arith.constant 0 : i32
    %c0_i32_0 = arith.constant 0 : i32
    return %arg0, %c0_i32, %arg1 : i32, i32, i32
  }
}

</mosaic_0001>

<llo_original>
// kernel: depth_separable_conv.1
$region0: #{depth_separable_conv.1}
  #allocation0 [shape = 'u32[]', space=smem, size = 0x4, offset = 0x4, fixed_abs, tag = 'smem constant byte address 0x4 - core index']
  #allocation1 [shape = 'u32[144,128]{1,0:T(1,128)}', space=vmem, size = 0x12000, scoped, tag = 'internal scratch']
  %s0 = inlined_call_operand.vmem [shape: f32[2,16,16,16], index: 0, kind: input, shape index: {}]
  %s1 = inlined_call_operand.vmem [shape: f32[9,16], index: 1, kind: input, shape index: {}]
  %s2 = inlined_call_operand.vmem [shape: f32[32,16], index: 2, kind: input, shape index: {}]
  %s3 = inlined_call_operand.vmem [shape: f32[32,1], index: 3, kind: input, shape index: {}]
  %s4 = inlined_call_operand.vmem [shape: f32[2,32,256], index: 4, kind: output, shape index: {}]
  %s5 = sld [smem:[#allocation0]]
  $region83: #{depth_separable_conv.1} parent=0
    _
  %s7 = ssub.s32 1, %s5
  %s8 = scalar_select 0, %s7, %s5
  $region1: #{depth_separable_conv.1} parent=0
    #allocation2 [shape = 'u8[32768]{0}', space=vmem, size = 0x8000, scoped, tag = 'output window, operand 0']
    loop: start=0, step=1, limit=6
    $region2: #{depth_separable_conv.1} parent=1 // loop_pre_header
      _
    $region3: #{depth_separable_conv.1} parent=1 // loop_header
      %s10 = sphi 0, %s14
      %p11 = scmp.ge.s32.totalorder %s10, 6
      %s17 = sphi 0, %s29
      %s18 = sphi 0, %s25
      %s19 = sphi 0, %s17
      %s20 = sphi 0, %s18
      %s21 = sphi 0, %s19
      %s22 = sphi 0, %s20
      %s32 = sphi 0, %s34
      %s35 = sphi 0, %s32
      %s36 = sphi 0, %s35
      %s52 = sphi 0, %s36
      %s56 = sphi 0, %s56
      %s58 = sphi 0, %s56
      %s59 = sphi 0, %s58
      %s73 = sphi 0, %s59
      %s77 = sphi 0, %s77
      %s79 = sphi 0, %s77
      %s80 = sphi 0, %s79
      %s94 = sphi 0, %s80
      %s98 = sphi 0, %s98
      %s100 = sphi 0, %s98
      %s101 = sphi 0, %s100
      %s115 = sphi 0, %s101
      %s123 = sphi 0, %s125
      %s126 = sphi 0, %s123
      %s127 = sphi 0, %s126
      %s143 = sphi 0, %s127
    $region4: #{depth_separable_conv.1} parent=1 // loop_header_branch
      %13 = sbr.rel (%p11) target = $region8
    $region5: #{depth_separable_conv.1} parent=1 // loop_body
      %s15 = ssub.s32 %s10, 1
      %s16 = ssub.s32 %s10, 2
      %s23 = sadd.s32 1, %s18
      %p24 = scmp.ge.s32.totalorder %s23, 2
      %s25 = scalar_select %p24, 0, %s23
      %s26 = sadd.s32 1, %s17
      %s27 = scalar_select %p24, %s26, %s17
      %p28 = scmp.ge.s32.totalorder %s27, 2
      %s29 = scalar_select %p28, 0, %s27
      %s30 = ssub.s32 %s17, %s29
      %p31 = scmp.eq.s32.totalorder %s30, 0
      %s33 = sadd.s32 %s32, 1
      %s34 = scalar_select %p31, %s32, %s33
      %p37 = pneg %p31
      %p38 = scmp.eq.s32.totalorder %s10, 3
      %p39 = por %p37, %p38
      %p40 = scmp.ne.s32.totalorder %s32, %s35
      %p41 = scmp.eq.s32.totalorder %s10, 0
      %p42 = por %p40, %p41
      %p43 = scmp.ne.s32.totalorder %s32, %s35
      %p44 = scmp.eq.s32.totalorder %s15, 3
      %p45 = por %p43, %p44
      %p46 = scmp.ne.s32.totalorder %s35, %s36
      %p47 = scmp.eq.s32.totalorder %s15, 0
      %p48 = por %p46, %p47
      %p49 = scmp.ne.s32.totalorder %s35, %s36
      %p50 = scmp.eq.s32.totalorder %s16, 3
      %p51 = por %p49, %p50
      %p53 = scmp.ne.s32.totalorder %s36, %s52
      %p54 = scmp.eq.s32.totalorder %s16, 0
      %p55 = por %p53, %p54
      %s57 = sadd.s32 %s56, 1
      %p60 = scmp.eq.s32.totalorder %s10, 3
      %p61 = scmp.ne.s32.totalorder %s56, %s58
      %p62 = scmp.eq.s32.totalorder %s10, 0
      %p63 = por %p61, %p62
      %p64 = scmp.ne.s32.totalorder %s56, %s58
      %p65 = scmp.eq.s32.totalorder %s15, 3
      %p66 = por %p64, %p65
      %p67 = scmp.ne.s32.totalorder %s58, %s59
      %p68 = scmp.eq.s32.totalorder %s15, 0
      %p69 = por %p67, %p68
      %p70 = scmp.ne.s32.totalorder %s58, %s59
      %p71 = scmp.eq.s32.totalorder %s16, 3
      %p72 = por %p70, %p71
      %p74 = scmp.ne.s32.totalorder %s59, %s73
      %p75 = scmp.eq.s32.totalorder %s16, 0
      %p76 = por %p74, %p75
      %s78 = sadd.s32 %s77, 1
      %p81 = scmp.eq.s32.totalorder %s10, 3
      %p82 = scmp.ne.s32.totalorder %s77, %s79
      %p83 = scmp.eq.s32.totalorder %s10, 0
      %p84 = por %p82, %p83
      %p85 = scmp.ne.s32.totalorder %s77, %s79
      %p86 = scmp.eq.s32.totalorder %s15, 3
      %p87 = por %p85, %p86
      %p88 = scmp.ne.s32.totalorder %s79, %s80
      %p89 = scmp.eq.s32.totalorder %s15, 0
      %p90 = por %p88, %p89
      %p91 = scmp.ne.s32.totalorder %s79, %s80
      %p92 = scmp.eq.s32.totalorder %s16, 3
      %p93 = por %p91, %p92
      %p95 = scmp.ne.s32.totalorder %s80, %s94
      %p96 = scmp.eq.s32.totalorder %s16, 0
      %p97 = por %p95, %p96
      %s99 = sadd.s32 %s98, 1
      %p102 = scmp.eq.s32.totalorder %s10, 3
      %p103 = scmp.ne.s32.totalorder %s98, %s100
      %p104 = scmp.eq.s32.totalorder %s10, 0
      %p105 = por %p103, %p104
      %p106 = scmp.ne.s32.totalorder %s98, %s100
      %p107 = scmp.eq.s32.totalorder %s15, 3
      %p108 = por %p106, %p107
      %p109 = scmp.ne.s32.totalorder %s100, %s101
      %p110 = scmp.eq.s32.totalorder %s15, 0
      %p111 = por %p109, %p110
      %p112 = scmp.ne.s32.totalorder %s100, %s101
      %p113 = scmp.eq.s32.totalorder %s16, 3
      %p114 = por %p112, %p113
      %p116 = scmp.ne.s32.totalorder %s101, %s115
      %p117 = scmp.eq.s32.totalorder %s16, 0
      %p118 = por %p116, %p117
      %s119 = ssub.s32 %s17, %s29
      %s120 = ssub.s32 %s18, %s25
      %s121 = sor.u32 %s119, %s120
      %p122 = scmp.eq.s32.totalorder %s121, 0
      %s124 = sadd.s32 %s123, 1
      %s125 = scalar_select %p122, %s123, %s124
      %p128 = pneg %p122
      %p129 = scmp.eq.s32.totalorder %s10, 3
      %p130 = por %p128, %p129
      %p131 = scmp.ne.s32.totalorder %s123, %s126
      %p132 = scmp.eq.s32.totalorder %s10, 0
      %p133 = por %p131, %p132
      %p134 = scmp.ne.s32.totalorder %s123, %s126
      %p135 = scmp.eq.s32.totalorder %s15, 3
      %p136 = por %p134, %p135
      %p137 = scmp.ne.s32.totalorder %s126, %s127
      %p138 = scmp.eq.s32.totalorder %s15, 0
      %p139 = por %p137, %p138
      %p140 = scmp.ne.s32.totalorder %s126, %s127
      %p141 = scmp.eq.s32.totalorder %s16, 3
      %p142 = por %p140, %p141
      %p144 = scmp.ne.s32.totalorder %s127, %s143
      %p145 = scmp.eq.s32.totalorder %s16, 0
      %p146 = por %p144, %p145
      %p147 = scmp.le.s32.totalorder 1, %s10
      %p148 = scmp.lt.s32.totalorder %s10, 5
      %p149 = pnand %p147, %p148
      %p150 = pneg %p149
      // Predicated region
      $region9: #{depth_separable_conv.1} parent=5 // pred_check
        _
      $region10: #{depth_separable_conv.1} parent=5 // pred_check_branch
        %152 = sbr.rel (%p149) target = $region12
      $region11: #{depth_separable_conv.1} parent=5 // pred_region
        %s153 = ssub.s32 %s10, 1
        // Predicated region
        $region13: #{depth_separable_conv.1} parent=11 // pred_check
          %p154 = pneg %p69
        $region14: #{depth_separable_conv.1} parent=11 // pred_check_branch
          %156 = sbr.rel (%p154) target = $region16
        $region15: #{depth_separable_conv.1} parent=11 // pred_region
          _
        $region16: #{depth_separable_conv.1} parent=11 // pred_fallthru
          _
        // Predicated region
        $region17: #{depth_separable_conv.1} parent=11 // pred_check
          %p157 = pneg %p90
        $region18: #{depth_separable_conv.1} parent=11 // pred_check_branch
          %159 = sbr.rel (%p157) target = $region20
        $region19: #{depth_separable_conv.1} parent=11 // pred_region
          _
        $region20: #{depth_separable_conv.1} parent=11 // pred_fallthru
          _
        // Predicated region
        $region21: #{depth_separable_conv.1} parent=11 // pred_check
          %p160 = pneg %p111
        $region22: #{depth_separable_conv.1} parent=11 // pred_check_branch
          %162 = sbr.rel (%p160) target = $region24
        $region23: #{depth_separable_conv.1} parent=11 // pred_region
          _
        $region24: #{depth_separable_conv.1} parent=11 // pred_fallthru
          _
      $region12: #{depth_separable_conv.1} parent=5 // pred_fallthru
        _
      %p163 = scmp.lt.s32.totalorder %s10, 4
      // Predicated region
      $region25: #{depth_separable_conv.1} parent=5 // pred_check
        %p164 = pneg %p163
      $region26: #{depth_separable_conv.1} parent=5 // pred_check_branch
        %166 = sbr.rel (%p164) target = $region28
      $region27: #{depth_separable_conv.1} parent=5 // pred_region
        // Predicated region
        $region29: #{depth_separable_conv.1} parent=27 // pred_check
          %p167 = pneg %p42
        $region30: #{depth_separable_conv.1} parent=27 // pred_check_branch
          %169 = sbr.rel (%p167) target = $region32
        $region31: #{depth_separable_conv.1} parent=27 // pred_region
          %p170 = scmp.lt.s32.totalorder %s17, 1
          %s171 = scalar_select %p170, %s17, 1
          %s172 = smul.addr %s171, 32
          %s173 = smul.addr %s172, 8
          %s174 = scalar_lea.vmem %s0, %s173
        $region32: #{depth_separable_conv.1} parent=27 // pred_fallthru
          _
      $region28: #{depth_separable_conv.1} parent=5 // pred_fallthru
        _
      %p175 = scmp.le.s32.totalorder 1, %s10
      %p176 = scmp.lt.s32.totalorder %s10, 5
      %p177 = pnand %p175, %p176
      %p178 = pneg %p177
      // Predicated region
      $region33: #{depth_separable_conv.1} parent=5 // pred_check
        _
      $region34: #{depth_separable_conv.1} parent=5 // pred_check_branch
        %180 = sbr.rel (%p177) target = $region36
      $region35: #{depth_separable_conv.1} parent=5 // pred_region
        %s181 = ssub.s32 %s10, 1
        %p182 = scmp.lt.s32.totalorder %s19, 1
        %s183 = scalar_select %p182, %s19, 1
        %s184 = smul.addr %s183, 32
        %s185 = smul.addr %s184, 8
        %s186 = scalar_lea.vmem %s0, %s185
        %p187 = pneg %p48
        %p188 = pneg %p45
        %p189 = pneg %p69
        %p190 = pneg %p66
        %p191 = pneg %p90
        %p192 = pneg %p87
        %p193 = pneg %p111
        %p194 = pneg %p108
        %p195 = pneg %p139
        %p196 = pneg %p136
        %s197 = sand.u32 %s126, 1
        %s198 = sand.u32 %s126, 1
        %s199 = smul.addr %s198, 32
        %s200 = scalar_lea.vmem [#allocation2], %s199
        %p201 = scmp.lt.s32.totalorder %s19, 1
        %s202 = scalar_select %p201, %s19, 1
        %s203 = smul.addr %s202, 32
        %s204 = smul.addr %s203, 8
        %s205 = scalar_lea.vmem %s0, %s204
        %s206 = smul.u32 %s20, 8
        %s207 = smul.u32 %s206, 16
        %s208 = scalar_lea.vmem %s205, %s207
        %v209 = vld [vmem:[%s208] sm:$0xff]
        %v210 = vld [vmem:[%s208 + $0x8] sm:$0xff]
        %v211 = vld [vmem:[%s208 + $0x10] sm:$0xff]
        %v212 = vld [vmem:[%s208 + $0x18] sm:$0xff]
        %v213 = vld [vmem:[%s208 + $0x20] sm:$0xff]
        %v214 = vld [vmem:[%s208 + $0x28] sm:$0xff]
        %v215 = vld [vmem:[%s208 + $0x30] sm:$0xff]
        %v216 = vld [vmem:[%s208 + $0x38] sm:$0xff]
        %v217 = vld [vmem:[%s208 + $0x40] sm:$0xff]
        %v218 = vld [vmem:[%s208 + $0x48] sm:$0xff]
        %v219 = vld [vmem:[%s208 + $0x50] sm:$0xff]
        %v220 = vld [vmem:[%s208 + $0x58] sm:$0xff]
        %v221 = vld [vmem:[%s208 + $0x60] sm:$0xff]
        %v222 = vld [vmem:[%s208 + $0x68] sm:$0xff]
        %v223 = vld [vmem:[%s208 + $0x70] sm:$0xff]
        %v224 = vld [vmem:[%s208 + $0x78] sm:$0xff]
        %s225 = ssub.s32 %s206, 1
        %p226 = scmp.gt.s32.totalorder %s225, 0
        %s227 = scalar_select %p226, %s225, 0
        %s228 = smul.u32 %s227, 16
        %s229 = scalar_lea.vmem %s205, %s228
        %v230 = vld [vmem:[%s229] sm:$0xff]
        %v231 = vld [vmem:[%s229 + $0x8] sm:$0xff]
        %p232 = scmp.gt.s32.totalorder %s206, 0
        %s233 = scalar_select %p232, 1, 0
        %v234 = vstv %s233
        %vm235 = vcmp.eq.s32.totalorder %v234, 1
        %v236 = vsel %vm235, %v230, 0.0
        %v237 = vsel %vm235, %v231, 0.0
        %s238 = sadd.s32 %s206, 8
        %p239 = scmp.lt.s32.totalorder %s238, 15
        %s240 = scalar_select %p239, %s238, 15
        %s241 = smul.u32 %s240, 16
        %s242 = scalar_lea.vmem %s205, %s241
        %v243 = vld [vmem:[%s242] sm:$0xff]
        %v244 = vld [vmem:[%s242 + $0x8] sm:$0xff]
        %p245 = scmp.lt.s32.totalorder %s238, 16
        %s246 = scalar_select %p245, 1, 0
        %v247 = vstv %s246
        %vm248 = vcmp.eq.s32.totalorder %v247, 1
        %v249 = vsel %vm248, %v243, 0.0
        %v250 = vsel %vm248, %v244, 0.0
        %vm271 = vcmask 1040384
        %v272 = vrot.slane %v236, 7
        %v273 = vrot.slane %v237, 7
        %v274 = vsel %vm271, %v272, %v273
        %v275 = vrot.slane %v209, 7
        %v276 = vrot.slane %v210, 7
        %v277 = vsel %vm271, %v275, %v276
        %v278 = vrot.slane %v211, 7
        %v279 = vrot.slane %v212, 7
        %v280 = vsel %vm271, %v278, %v279
        %v281 = vrot.slane %v213, 7
        %v282 = vrot.slane %v214, 7
        %v283 = vsel %vm271, %v281, %v282
        %v284 = vrot.slane %v215, 7
        %v285 = vrot.slane %v216, 7
        %v286 = vsel %vm271, %v284, %v285
        %v287 = vrot.slane %v217, 7
        %v288 = vrot.slane %v218, 7
        %v289 = vsel %vm271, %v287, %v288
        %v290 = vrot.slane %v219, 7
        %v291 = vrot.slane %v220, 7
        %v292 = vsel %vm271, %v290, %v291
        %v293 = vrot.slane %v221, 7
        %v294 = vrot.slane %v222, 7
        %v295 = vsel %vm271, %v293, %v294
        %v296 = vrot.slane %v223, 7
        %v297 = vrot.slane %v224, 7
        %v298 = vsel %vm271, %v296, %v297
        %v299 = vrot.slane %v249, 7
        %v300 = vrot.slane %v250, 7
        %v301 = vsel %vm271, %v299, %v300
        %v322 = vsel %vm271, 0.0, %v272
        %v323 = vsel %vm271, 0.0, %v275
        %v324 = vsel %vm271, 0.0, %v278
        %v325 = vsel %vm271, 0.0, %v281
        %v326 = vsel %vm271, 0.0, %v284
        %v327 = vsel %vm271, 0.0, %v287
        %v328 = vsel %vm271, 0.0, %v290
        %v329 = vsel %vm271, 0.0, %v293
        %v330 = vsel %vm271, 0.0, %v296
        %v331 = vsel %vm271, 0.0, %v299
        %vm332 = vcmask 1046528
        %v333 = vrot.slane %v236, 1
        %v334 = vrot.slane %v237, 1
        %v335 = vsel %vm332, %v333, %v334
        %v336 = vrot.slane %v209, 1
        %v337 = vrot.slane %v210, 1
        %v338 = vsel %vm332, %v336, %v337
        %v339 = vrot.slane %v211, 1
        %v340 = vrot.slane %v212, 1
        %v341 = vsel %vm332, %v339, %v340
        %v342 = vrot.slane %v213, 1
        %v343 = vrot.slane %v214, 1
        %v344 = vsel %vm332, %v342, %v343
        %v345 = vrot.slane %v215, 1
        %v346 = vrot.slane %v216, 1
        %v347 = vsel %vm332, %v345, %v346
        %v348 = vrot.slane %v217, 1
        %v349 = vrot.slane %v218, 1
        %v350 = vsel %vm332, %v348, %v349
        %v351 = vrot.slane %v219, 1
        %v352 = vrot.slane %v220, 1
        %v353 = vsel %vm332, %v351, %v352
        %v354 = vrot.slane %v221, 1
        %v355 = vrot.slane %v222, 1
        %v356 = vsel %vm332, %v354, %v355
        %v357 = vrot.slane %v223, 1
        %v358 = vrot.slane %v224, 1
        %v359 = vsel %vm332, %v357, %v358
        %v360 = vrot.slane %v249, 1
        %v361 = vrot.slane %v250, 1
        %v362 = vsel %vm332, %v360, %v361
        %v383 = vsel %vm332, %v334, 0.0
        %v384 = vsel %vm332, %v337, 0.0
        %v385 = vsel %vm332, %v340, 0.0
        %v386 = vsel %vm332, %v343, 0.0
        %v387 = vsel %vm332, %v346, 0.0
        %v388 = vsel %vm332, %v349, 0.0
        %v389 = vsel %vm332, %v352, 0.0
        %v390 = vsel %vm332, %v355, 0.0
        %v391 = vsel %vm332, %v358, 0.0
        %v392 = vsel %vm332, %v361, 0.0
        %v393 = vld [vmem:[%s1] sm:$0x1]
        %v394 = vlaneseq
        %v395 = vshrl.u32 %v394, 7
        %v396 = vsub.s32 0, %v395
        %v397 = vrot.slane %v393, %v396
        %v398 = vmul.f32 %v322, %v397
        %v399 = vmul.f32 %v274, %v397
        %v400 = vmul.f32 %v323, %v397
        %v401 = vmul.f32 %v277, %v397
        %v402 = vmul.f32 %v324, %v397
        %v403 = vmul.f32 %v280, %v397
        %v404 = vmul.f32 %v325, %v397
        %v405 = vmul.f32 %v283, %v397
        %v406 = vmul.f32 %v326, %v397
        %v407 = vmul.f32 %v286, %v397
        %v408 = vmul.f32 %v327, %v397
        %v409 = vmul.f32 %v289, %v397
        %v410 = vmul.f32 %v328, %v397
        %v411 = vmul.f32 %v292, %v397
        %v412 = vmul.f32 %v329, %v397
        %v413 = vmul.f32 %v295, %v397
        %v414 = vadd.f32 %v398, 0.0
        %v415 = vadd.f32 %v399, 0.0
        %v416 = vadd.f32 %v400, 0.0
        %v417 = vadd.f32 %v401, 0.0
        %v418 = vadd.f32 %v402, 0.0
        %v419 = vadd.f32 %v403, 0.0
        %v420 = vadd.f32 %v404, 0.0
        %v421 = vadd.f32 %v405, 0.0
        %v422 = vadd.f32 %v406, 0.0
        %v423 = vadd.f32 %v407, 0.0
        %v424 = vadd.f32 %v408, 0.0
        %v425 = vadd.f32 %v409, 0.0
        %v426 = vadd.f32 %v410, 0.0
        %v427 = vadd.f32 %v411, 0.0
        %v428 = vadd.f32 %v412, 0.0
        %v429 = vadd.f32 %v413, 0.0
        %v430 = vld [vmem:[%s1 + $0x1] sm:$0x1]
        %v431 = vlaneseq
        %v432 = vshrl.u32 %v431, 7
        %v433 = vsub.s32 0, %v432
        %v434 = vrot.slane %v430, %v433
        %v435 = vmul.f32 %v236, %v434
        %v436 = vmul.f32 %v237, %v434
        %v437 = vmul.f32 %v209, %v434
        %v438 = vmul.f32 %v210, %v434
        %v439 = vmul.f32 %v211, %v434
        %v440 = vmul.f32 %v212, %v434
        %v441 = vmul.f32 %v213, %v434
        %v442 = vmul.f32 %v214, %v434
        %v443 = vmul.f32 %v215, %v434
        %v444 = vmul.f32 %v216, %v434
        %v445 = vmul.f32 %v217, %v434
        %v446 = vmul.f32 %v218, %v434
        %v447 = vmul.f32 %v219, %v434
        %v448 = vmul.f32 %v220, %v434
        %v449 = vmul.f32 %v221, %v434
        %v450 = vmul.f32 %v222, %v434
        %v451 = vadd.f32 %v414, %v435
        %v452 = vadd.f32 %v415, %v436
        %v453 = vadd.f32 %v416, %v437
        %v454 = vadd.f32 %v417, %v438
        %v455 = vadd.f32 %v418, %v439
        %v456 = vadd.f32 %v419, %v440
        %v457 = vadd.f32 %v420, %v441
        %v458 = vadd.f32 %v421, %v442
        %v459 = vadd.f32 %v422, %v443
        %v460 = vadd.f32 %v423, %v444
        %v461 = vadd.f32 %v424, %v445
        %v462 = vadd.f32 %v425, %v446
        %v463 = vadd.f32 %v426, %v447
        %v464 = vadd.f32 %v427, %v448
        %v465 = vadd.f32 %v428, %v449
        %v466 = vadd.f32 %v429, %v450
        %v467 = vld [vmem:[%s1 + $0x2] sm:$0x1]
        %v468 = vlaneseq
        %v469 = vshrl.u32 %v468, 7
        %v470 = vsub.s32 0, %v469
        %v471 = vrot.slane %v467, %v470
        %v472 = vmul.f32 %v335, %v471
        %v473 = vmul.f32 %v383, %v471
        %v474 = vmul.f32 %v338, %v471
        %v475 = vmul.f32 %v384, %v471
        %v476 = vmul.f32 %v341, %v471
        %v477 = vmul.f32 %v385, %v471
        %v478 = vmul.f32 %v344, %v471
        %v479 = vmul.f32 %v386, %v471
        %v480 = vmul.f32 %v347, %v471
        %v481 = vmul.f32 %v387, %v471
        %v482 = vmul.f32 %v350, %v471
        %v483 = vmul.f32 %v388, %v471
        %v484 = vmul.f32 %v353, %v471
        %v485 = vmul.f32 %v389, %v471
        %v486 = vmul.f32 %v356, %v471
        %v487 = vmul.f32 %v390, %v471
        %v488 = vadd.f32 %v451, %v472
        %v489 = vadd.f32 %v452, %v473
        %v490 = vadd.f32 %v453, %v474
        %v491 = vadd.f32 %v454, %v475
        %v492 = vadd.f32 %v455, %v476
        %v493 = vadd.f32 %v456, %v477
        %v494 = vadd.f32 %v457, %v478
        %v495 = vadd.f32 %v458, %v479
        %v496 = vadd.f32 %v459, %v480
        %v497 = vadd.f32 %v460, %v481
        %v498 = vadd.f32 %v461, %v482
        %v499 = vadd.f32 %v462, %v483
        %v500 = vadd.f32 %v463, %v484
        %v501 = vadd.f32 %v464, %v485
        %v502 = vadd.f32 %v465, %v486
        %v503 = vadd.f32 %v466, %v487
        %v504 = vld [vmem:[%s1 + $0x3] sm:$0x1]
        %v505 = vlaneseq
        %v506 = vshrl.u32 %v505, 7
        %v507 = vsub.s32 0, %v506
        %v508 = vrot.slane %v504, %v507
        %v509 = vmul.f32 %v323, %v508
        %v510 = vmul.f32 %v277, %v508
        %v511 = vmul.f32 %v324, %v508
        %v512 = vmul.f32 %v280, %v508
        %v513 = vmul.f32 %v325, %v508
        %v514 = vmul.f32 %v283, %v508
        %v515 = vmul.f32 %v326, %v508
        %v516 = vmul.f32 %v286, %v508
        %v517 = vmul.f32 %v327, %v508
        %v518 = vmul.f32 %v289, %v508
        %v519 = vmul.f32 %v328, %v508
        %v520 = vmul.f32 %v292, %v508
        %v521 = vmul.f32 %v329, %v508
        %v522 = vmul.f32 %v295, %v508
        %v523 = vmul.f32 %v330, %v508
        %v524 = vmul.f32 %v298, %v508
        %v525 = vadd.f32 %v488, %v509
        %v526 = vadd.f32 %v489, %v510
        %v527 = vadd.f32 %v490, %v511
        %v528 = vadd.f32 %v491, %v512
        %v529 = vadd.f32 %v492, %v513
        %v530 = vadd.f32 %v493, %v514
        %v531 = vadd.f32 %v494, %v515
        %v532 = vadd.f32 %v495, %v516
        %v533 = vadd.f32 %v496, %v517
        %v534 = vadd.f32 %v497, %v518
        %v535 = vadd.f32 %v498, %v519
        %v536 = vadd.f32 %v499, %v520
        %v537 = vadd.f32 %v500, %v521
        %v538 = vadd.f32 %v501, %v522
        %v539 = vadd.f32 %v502, %v523
        %v540 = vadd.f32 %v503, %v524
        %v541 = vld [vmem:[%s1 + $0x4] sm:$0x1]
        %v542 = vlaneseq
        %v543 = vshrl.u32 %v542, 7
        %v544 = vsub.s32 0, %v543
        %v545 = vrot.slane %v541, %v544
        %v546 = vmul.f32 %v209, %v545
        %v547 = vmul.f32 %v210, %v545
        %v548 = vmul.f32 %v211, %v545
        %v549 = vmul.f32 %v212, %v545
        %v550 = vmul.f32 %v213, %v545
        %v551 = vmul.f32 %v214, %v545
        %v552 = vmul.f32 %v215, %v545
        %v553 = vmul.f32 %v216, %v545
        %v554 = vmul.f32 %v217, %v545
        %v555 = vmul.f32 %v218, %v545
        %v556 = vmul.f32 %v219, %v545
        %v557 = vmul.f32 %v220, %v545
        %v558 = vmul.f32 %v221, %v545
        %v559 = vmul.f32 %v222, %v545
        %v560 = vmul.f32 %v223, %v545
        %v561 = vmul.f32 %v224, %v545
        %v562 = vadd.f32 %v525, %v546
        %v563 = vadd.f32 %v526, %v547
        %v564 = vadd.f32 %v527, %v548
        %v565 = vadd.f32 %v528, %v549
        %v566 = vadd.f32 %v529, %v550
        %v567 = vadd.f32 %v530, %v551
        %v568 = vadd.f32 %v531, %v552
        %v569 = vadd.f32 %v532, %v553
        %v570 = vadd.f32 %v533, %v554
        %v571 = vadd.f32 %v534, %v555
        %v572 = vadd.f32 %v535, %v556
        %v573 = vadd.f32 %v536, %v557
        %v574 = vadd.f32 %v537, %v558
        %v575 = vadd.f32 %v538, %v559
        %v576 = vadd.f32 %v539, %v560
        %v577 = vadd.f32 %v540, %v561
        %v578 = vld [vmem:[%s1 + $0x5] sm:$0x1]
        %v579 = vlaneseq
        %v580 = vshrl.u32 %v579, 7
        %v581 = vsub.s32 0, %v580
        %v582 = vrot.slane %v578, %v581
        %v583 = vmul.f32 %v338, %v582
        %v584 = vmul.f32 %v384, %v582
        %v585 = vmul.f32 %v341, %v582
        %v586 = vmul.f32 %v385, %v582
        %v587 = vmul.f32 %v344, %v582
        %v588 = vmul.f32 %v386, %v582
        %v589 = vmul.f32 %v347, %v582
        %v590 = vmul.f32 %v387, %v582
        %v591 = vmul.f32 %v350, %v582
        %v592 = vmul.f32 %v388, %v582
        %v593 = vmul.f32 %v353, %v582
        %v594 = vmul.f32 %v389, %v582
        %v595 = vmul.f32 %v356, %v582
        %v596 = vmul.f32 %v390, %v582
        %v597 = vmul.f32 %v359, %v582
        %v598 = vmul.f32 %v391, %v582
        %v599 = vadd.f32 %v562, %v583
        %v600 = vadd.f32 %v563, %v584
        %v601 = vadd.f32 %v564, %v585
        %v602 = vadd.f32 %v565, %v586
        %v603 = vadd.f32 %v566, %v587
        %v604 = vadd.f32 %v567, %v588
        %v605 = vadd.f32 %v568, %v589
        %v606 = vadd.f32 %v569, %v590
        %v607 = vadd.f32 %v570, %v591
        %v608 = vadd.f32 %v571, %v592
        %v609 = vadd.f32 %v572, %v593
        %v610 = vadd.f32 %v573, %v594
        %v611 = vadd.f32 %v574, %v595
        %v612 = vadd.f32 %v575, %v596
        %v613 = vadd.f32 %v576, %v597
        %v614 = vadd.f32 %v577, %v598
        %v615 = vld [vmem:[%s1 + $0x6] sm:$0x1]
        %v616 = vlaneseq
        %v617 = vshrl.u32 %v616, 7
        %v618 = vsub.s32 0, %v617
        %v619 = vrot.slane %v615, %v618
        %v620 = vmul.f32 %v324, %v619
        %v621 = vmul.f32 %v280, %v619
        %v622 = vmul.f32 %v325, %v619
        %v623 = vmul.f32 %v283, %v619
        %v624 = vmul.f32 %v326, %v619
        %v625 = vmul.f32 %v286, %v619
        %v626 = vmul.f32 %v327, %v619
        %v627 = vmul.f32 %v289, %v619
        %v628 = vmul.f32 %v328, %v619
        %v629 = vmul.f32 %v292, %v619
        %v630 = vmul.f32 %v329, %v619
        %v631 = vmul.f32 %v295, %v619
        %v632 = vmul.f32 %v330, %v619
        %v633 = vmul.f32 %v298, %v619
        %v634 = vmul.f32 %v331, %v619
        %v635 = vmul.f32 %v301, %v619
        %v636 = vadd.f32 %v599, %v620
        %v637 = vadd.f32 %v600, %v621
        %v638 = vadd.f32 %v601, %v622
        %v639 = vadd.f32 %v602, %v623
        %v640 = vadd.f32 %v603, %v624
        %v641 = vadd.f32 %v604, %v625
        %v642 = vadd.f32 %v605, %v626
        %v643 = vadd.f32 %v606, %v627
        %v644 = vadd.f32 %v607, %v628
        %v645 = vadd.f32 %v608, %v629
        %v646 = vadd.f32 %v609, %v630
        %v647 = vadd.f32 %v610, %v631
        %v648 = vadd.f32 %v611, %v632
        %v649 = vadd.f32 %v612, %v633
        %v650 = vadd.f32 %v613, %v634
        %v651 = vadd.f32 %v614, %v635
        %v652 = vld [vmem:[%s1 + $0x7] sm:$0x1]
        %v653 = vlaneseq
        %v654 = vshrl.u32 %v653, 7
        %v655 = vsub.s32 0, %v654
        %v656 = vrot.slane %v652, %v655
        %v657 = vmul.f32 %v211, %v656
        %v658 = vmul.f32 %v212, %v656
        %v659 = vmul.f32 %v213, %v656
        %v660 = vmul.f32 %v214, %v656
        %v661 = vmul.f32 %v215, %v656
        %v662 = vmul.f32 %v216, %v656
        %v663 = vmul.f32 %v217, %v656
        %v664 = vmul.f32 %v218, %v656
        %v665 = vmul.f32 %v219, %v656
        %v666 = vmul.f32 %v220, %v656
        %v667 = vmul.f32 %v221, %v656
        %v668 = vmul.f32 %v222, %v656
        %v669 = vmul.f32 %v223, %v656
        %v670 = vmul.f32 %v224, %v656
        %v671 = vmul.f32 %v249, %v656
        %v672 = vmul.f32 %v250, %v656
        %v673 = vadd.f32 %v636, %v657
        %v674 = vadd.f32 %v637, %v658
        %v675 = vadd.f32 %v638, %v659
        %v676 = vadd.f32 %v639, %v660
        %v677 = vadd.f32 %v640, %v661
        %v678 = vadd.f32 %v641, %v662
        %v679 = vadd.f32 %v642, %v663
        %v680 = vadd.f32 %v643, %v664
        %v681 = vadd.f32 %v644, %v665
        %v682 = vadd.f32 %v645, %v666
        %v683 = vadd.f32 %v646, %v667
        %v684 = vadd.f32 %v647, %v668
        %v685 = vadd.f32 %v648, %v669
        %v686 = vadd.f32 %v649, %v670
        %v687 = vadd.f32 %v650, %v671
        %v688 = vadd.f32 %v651, %v672
        %v689 = vld [vmem:[%s1 + $0x8] sm:$0x1]
        %v690 = vlaneseq
        %v691 = vshrl.u32 %v690, 7
        %v692 = vsub.s32 0, %v691
        %v693 = vrot.slane %v689, %v692
        %v694 = vmul.f32 %v341, %v693
        %v695 = vmul.f32 %v385, %v693
        %v696 = vmul.f32 %v344, %v693
        %v697 = vmul.f32 %v386, %v693
        %v698 = vmul.f32 %v347, %v693
        %v699 = vmul.f32 %v387, %v693
        %v700 = vmul.f32 %v350, %v693
        %v701 = vmul.f32 %v388, %v693
        %v702 = vmul.f32 %v353, %v693
        %v703 = vmul.f32 %v389, %v693
        %v704 = vmul.f32 %v356, %v693
        %v705 = vmul.f32 %v390, %v693
        %v706 = vmul.f32 %v359, %v693
        %v707 = vmul.f32 %v391, %v693
        %v708 = vmul.f32 %v362, %v693
        %v709 = vmul.f32 %v392, %v693
        %v710 = vadd.f32 %v673, %v694
        %v711 = vadd.f32 %v674, %v695
        %v712 = vadd.f32 %v675, %v696
        %v713 = vadd.f32 %v676, %v697
        %v714 = vadd.f32 %v677, %v698
        %v715 = vadd.f32 %v678, %v699
        %v716 = vadd.f32 %v679, %v700
        %v717 = vadd.f32 %v680, %v701
        %v718 = vadd.f32 %v681, %v702
        %v719 = vadd.f32 %v682, %v703
        %v720 = vadd.f32 %v683, %v704
        %v721 = vadd.f32 %v684, %v705
        %v722 = vadd.f32 %v685, %v706
        %v723 = vadd.f32 %v686, %v707
        %v724 = vadd.f32 %v687, %v708
        %v725 = vadd.f32 %v688, %v709
        %v726 = vld [vmem:[%s2] sm:$0xff]
        %v727 = vld [vmem:[%s2 + $0x8] sm:$0xff]
        %v728 = vld [vmem:[%s2 + $0x10] sm:$0xff]
        %v729 = vld [vmem:[%s2 + $0x18] sm:$0xff]
        %v730 = vld [vmem:[%s3] sm:$0xff]
        %v731 = vld [vmem:[%s3 + $0x8] sm:$0xff]
        %v732 = vld [vmem:[%s3 + $0x10] sm:$0xff]
        %v733 = vld [vmem:[%s3 + $0x18] sm:$0xff]
        %735 = vset.pattern.permute.xlu0 0
        %736 = vperm.xlu0 %735, %v730
        %v737 = vpop.permute.xlu0 %736
        %740 = vset.pattern.permute.xlu0 0
        %741 = vperm.xlu0 %740, %v731
        %v742 = vpop.permute.xlu0 %741
        %745 = vset.pattern.permute.xlu0 0
        %746 = vperm.xlu0 %745, %v732
        %v747 = vpop.permute.xlu0 %746
        %750 = vset.pattern.permute.xlu0 0
        %751 = vperm.xlu0 %750, %v733
        %v752 = vpop.permute.xlu0 %751
        %vm754 = vcmask 130048
        %v756 = vsel %vm754, %v726, 0
        %v759 = vsel %vm754, %v727, 0
        %v762 = vsel %vm754, %v728, 0
        %v765 = vsel %vm754, %v729, 0
        %v768 = vsel %vm754, %v710, 0
        %v771 = vsel %vm754, %v711, 0
        %v774 = vsel %vm754, %v712, 0
        %v777 = vsel %vm754, %v713, 0
        %v780 = vsel %vm754, %v714, 0
        %v783 = vsel %vm754, %v715, 0
        %v786 = vsel %vm754, %v716, 0
        %v789 = vsel %vm754, %v717, 0
        %v792 = vsel %vm754, %v718, 0
        %v795 = vsel %vm754, %v719, 0
        %v798 = vsel %vm754, %v720, 0
        %v801 = vsel %vm754, %v721, 0
        %v804 = vsel %vm754, %v722, 0
        %v807 = vsel %vm754, %v723, 0
        %v810 = vsel %vm754, %v724, 0
        %v813 = vsel %vm754, %v725, 0
        %815 = vmatprep.subr.mxu0 0.0
        %v816 = vand.u32 %v768, 4294901760
        %817 = vmatpush1.xpose.msra.mxu0 %v816
        %818 = vmatprep.subr.mxu0 0.0
        %v819 = vand.u32 %v771, 4294901760
        %820 = vmatpush1.xpose.msra.mxu0 %v819
        %821 = vmatprep.subr.mxu0 0.0
        %v822 = vand.u32 %v774, 4294901760
        %823 = vmatpush1.xpose.msra.mxu0 %v822
        %824 = vmatprep.subr.mxu0 0.0
        %v825 = vand.u32 %v777, 4294901760
        %826 = vmatpush1.xpose.msra.mxu0 %v825
        %827 = vmatprep.subr.mxu0 0.0
        %v828 = vand.u32 %v780, 4294901760
        %829 = vmatpush1.xpose.msra.mxu0 %v828
        %830 = vmatprep.subr.mxu0 0.0
        %v831 = vand.u32 %v783, 4294901760
        %832 = vmatpush1.xpose.msra.mxu0 %v831
        %833 = vmatprep.subr.mxu0 0.0
        %v834 = vand.u32 %v786, 4294901760
        %835 = vmatpush1.xpose.msra.mxu0 %v834
        %836 = vmatprep.subr.mxu0 0.0
        %v837 = vand.u32 %v789, 4294901760
        %838 = vmatpush1.xpose.msra.mxu0 %v837
        %839 = vmatprep.subr.mxu0 0.0
        %v840 = vand.u32 %v792, 4294901760
        %841 = vmatpush1.xpose.msra.mxu0 %v840
        %842 = vmatprep.subr.mxu0 0.0
        %v843 = vand.u32 %v795, 4294901760
        %844 = vmatpush1.xpose.msra.mxu0 %v843
        %845 = vmatprep.subr.mxu0 0.0
        %v846 = vand.u32 %v798, 4294901760
        %847 = vmatpush1.xpose.msra.mxu0 %v846
        %848 = vmatprep.subr.mxu0 0.0
        %v849 = vand.u32 %v801, 4294901760
        %850 = vmatpush1.xpose.msra.mxu0 %v849
        %851 = vmatprep.subr.mxu0 0.0
        %v852 = vand.u32 %v804, 4294901760
        %853 = vmatpush1.xpose.msra.mxu0 %v852
        %854 = vmatprep.subr.mxu0 0.0
        %v855 = vand.u32 %v807, 4294901760
        %856 = vmatpush1.xpose.msra.mxu0 %v855
        %857 = vmatprep.subr.mxu0 0.0
        %v858 = vand.u32 %v810, 4294901760
        %859 = vmatpush1.xpose.msra.mxu0 %v858
        %860 = vmatprep.subr.mxu0 0.0
        %v861 = vand.u32 %v813, 4294901760
        %862 = vmatpush1.xpose.msra.mxu0 %v861
        %863 = vmatprep.subr.mxu0 0.0
        %864 = vmatpush1.xpose.msra.mxu0 0.0
        %865 = vmatprep.subr.mxu0 0.0
        %866 = vmatpush1.xpose.msra.mxu0 0.0
        %867 = vmatprep.subr.mxu0 0.0
        %868 = vmatpush1.xpose.msra.mxu0 0.0
        %869 = vmatprep.subr.mxu0 0.0
        %870 = vmatpush1.xpose.msra.mxu0 0.0
        %871 = vmatprep.subr.mxu0 0.0
        %872 = vmatpush1.xpose.msra.mxu0 0.0
        %873 = vmatprep.subr.mxu0 0.0
        %874 = vmatpush1.xpose.msra.mxu0 0.0
        %875 = vmatprep.subr.mxu0 0.0
        %876 = vmatpush1.xpose.msra.mxu0 0.0
        %877 = vmatprep.subr.mxu0 0.0
        %878 = vmatpush1.xpose.msra.mxu0 0.0
        %879 = vmatprep.subr.mxu0 0.0
        %880 = vmatpush1.xpose.msra.mxu0 0.0
        %881 = vmatprep.subr.mxu0 0.0
        %882 = vmatpush1.xpose.msra.mxu0 0.0
        %883 = vmatprep.subr.mxu0 0.0
        %884 = vmatpush1.xpose.msra.mxu0 0.0
        %885 = vmatprep.subr.mxu0 0.0
        %886 = vmatpush1.xpose.msra.mxu0 0.0
        %887 = vmatprep.subr.mxu0 0.0
        %888 = vmatpush1.xpose.msra.mxu0 0.0
        %889 = vmatprep.subr.mxu0 0.0
        %890 = vmatpush1.xpose.msra.mxu0 0.0
        %891 = vmatprep.subr.mxu0 0.0
        %892 = vmatpush1.xpose.msra.mxu0 0.0
        %893 = vmatprep.subr.mxu0 0.0
        %894 = vmatpush1.xpose.msra.mxu0 0.0
        %895 = vmatprep.mubr.f32.mxu0 0.0
        %v896 = vand.u32 %v756, 4294901760
        %v897 = vsub.f32 %v756, %v896
        %v898 = vand.u32 %v897, 4294901760
        %v899 = vsub.f32 %v897, %v898
        %v900 = vand.u32 %v899, 4294901760
        %901 = vmatmul.mubr.f32.gmra.mrb[0].mxu0 %v900
        %v902 = vpop.f32.mrb[0].mxu0
        %v903 = vadd.f32 %v737, %v902
        %v904 = vpop.f32.mrb[0].mxu0
        %905 = vmatprep.mubr.f32.mxu0 0.0
        %v906 = vand.u32 %v759, 4294901760
        %v907 = vsub.f32 %v759, %v906
        %v908 = vand.u32 %v907, 4294901760
        %v909 = vsub.f32 %v907, %v908
        %v910 = vand.u32 %v909, 4294901760
        %911 = vmatmul.mubr.f32.gmra.mrb[0].mxu0 %v910
        %v912 = vpop.f32.mrb[0].mxu0
        %v913 = vadd.f32 %v742, %v912
        %v914 = vpop.f32.mrb[0].mxu0
        %915 = vmatprep.mubr.f32.mxu0 0.0
        %v916 = vand.u32 %v762, 4294901760
        %v917 = vsub.f32 %v762, %v916
        %v918 = vand.u32 %v917, 4294901760
        %v919 = vsub.f32 %v917, %v918
        %v920 = vand.u32 %v919, 4294901760
        %921 = vmatmul.mubr.f32.gmra.mrb[0].mxu0 %v920
        %v922 = vpop.f32.mrb[0].mxu0
        %v923 = vadd.f32 %v747, %v922
        %v924 = vpop.f32.mrb[0].mxu0
        %925 = vmatprep.mubr.f32.mxu0 0.0
        %v926 = vand.u32 %v765, 4294901760
        %v927 = vsub.f32 %v765, %v926
        %v928 = vand.u32 %v927, 4294901760
        %v929 = vsub.f32 %v927, %v928
        %v930 = vand.u32 %v929, 4294901760
        %931 = vmatmul.mubr.f32.gmra.mrb[0].mxu0 %v930
        %v932 = vpop.f32.mrb[0].mxu0
        %v933 = vadd.f32 %v752, %v932
        %v934 = vpop.f32.mrb[0].mxu0
        %935 = vdwg.mxu0
        %936 = vmatprep.subr.mxu0 0.0
        %v937 = vand.u32 %v768, 4294901760
        %v938 = vsub.f32 %v768, %v937
        %v939 = vand.u32 %v938, 4294901760
        %v940 = vsub.f32 %v938, %v939
        %v941 = vand.u32 %v940, 4294901760
        %942 = vmatpush1.xpose.msra.mxu0 %v941
        %943 = vmatprep.subr.mxu0 0.0
        %v944 = vand.u32 %v771, 4294901760
        %v945 = vsub.f32 %v771, %v944
        %v946 = vand.u32 %v945, 4294901760
        %v947 = vsub.f32 %v945, %v946
        %v948 = vand.u32 %v947, 4294901760
        %949 = vmatpush1.xpose.msra.mxu0 %v948
        %950 = vmatprep.subr.mxu0 0.0
        %v951 = vand.u32 %v774, 4294901760
        %v952 = vsub.f32 %v774, %v951
        %v953 = vand.u32 %v952, 4294901760
        %v954 = vsub.f32 %v952, %v953
        %v955 = vand.u32 %v954, 4294901760
        %956 = vmatpush1.xpose.msra.mxu0 %v955
        %957 = vmatprep.subr.mxu0 0.0
        %v958 = vand.u32 %v777, 4294901760
        %v959 = vsub.f32 %v777, %v958
        %v960 = vand.u32 %v959, 4294901760
        %v961 = vsub.f32 %v959, %v960
        %v962 = vand.u32 %v961, 4294901760
        %963 = vmatpush1.xpose.msra.mxu0 %v962
        %964 = vmatprep.subr.mxu0 0.0
        %v965 = vand.u32 %v780, 4294901760
        %v966 = vsub.f32 %v780, %v965
        %v967 = vand.u32 %v966, 4294901760
        %v968 = vsub.f32 %v966, %v967
        %v969 = vand.u32 %v968, 4294901760
        %970 = vmatpush1.xpose.msra.mxu0 %v969
        %971 = vmatprep.subr.mxu0 0.0
        %v972 = vand.u32 %v783, 4294901760
        %v973 = vsub.f32 %v783, %v972
        %v974 = vand.u32 %v973, 4294901760
        %v975 = vsub.f32 %v973, %v974
        %v976 = vand.u32 %v975, 4294901760
        %977 = vmatpush1.xpose.msra.mxu0 %v976
        %978 = vmatprep.subr.mxu0 0.0
        %v979 = vand.u32 %v786, 4294901760
        %v980 = vsub.f32 %v786, %v979
        %v981 = vand.u32 %v980, 4294901760
        %v982 = vsub.f32 %v980, %v981
        %v983 = vand.u32 %v982, 4294901760
        %984 = vmatpush1.xpose.msra.mxu0 %v983
        %985 = vmatprep.subr.mxu0 0.0
        %v986 = vand.u32 %v789, 4294901760
        %v987 = vsub.f32 %v789, %v986
        %v988 = vand.u32 %v987, 4294901760
        %v989 = vsub.f32 %v987, %v988
        %v990 = vand.u32 %v989, 4294901760
        %991 = vmatpush1.xpose.msra.mxu0 %v990
        %992 = vmatprep.subr.mxu0 0.0
        %v993 = vand.u32 %v792, 4294901760
        %v994 = vsub.f32 %v792, %v993
        %v995 = vand.u32 %v994, 4294901760
        %v996 = vsub.f32 %v994, %v995
        %v997 = vand.u32 %v996, 4294901760
        %998 = vmatpush1.xpose.msra.mxu0 %v997
        %999 = vmatprep.subr.mxu0 0.0
        %v1000 = vand.u32 %v795, 4294901760
        %v1001 = vsub.f32 %v795, %v1000
        %v1002 = vand.u32 %v1001, 4294901760
        %v1003 = vsub.f32 %v1001, %v1002
        %v1004 = vand.u32 %v1003, 4294901760
        %1005 = vmatpush1.xpose.msra.mxu0 %v1004
        %1006 = vmatprep.subr.mxu0 0.0
        %v1007 = vand.u32 %v798, 4294901760
        %v1008 = vsub.f32 %v798, %v1007
        %v1009 = vand.u32 %v1008, 4294901760
        %v1010 = vsub.f32 %v1008, %v1009
        %v1011 = vand.u32 %v1010, 4294901760
        %1012 = vmatpush1.xpose.msra.mxu0 %v1011
        %1013 = vmatprep.subr.mxu0 0.0
        %v1014 = vand.u32 %v801, 4294901760
        %v1015 = vsub.f32 %v801, %v1014
        %v1016 = vand.u32 %v1015, 4294901760
        %v1017 = vsub.f32 %v1015, %v1016
        %v1018 = vand.u32 %v1017, 4294901760
        %1019 = vmatpush1.xpose.msra.mxu0 %v1018
        %1020 = vmatprep.subr.mxu0 0.0
        %v1021 = vand.u32 %v804, 4294901760
        %v1022 = vsub.f32 %v804, %v1021
        %v1023 = vand.u32 %v1022, 4294901760
        %v1024 = vsub.f32 %v1022, %v1023
        %v1025 = vand.u32 %v1024, 4294901760
        %1026 = vmatpush1.xpose.msra.mxu0 %v1025
        %1027 = vmatprep.subr.mxu0 0.0
        %v1028 = vand.u32 %v807, 4294901760
        %v1029 = vsub.f32 %v807, %v1028
        %v1030 = vand.u32 %v1029, 4294901760
        %v1031 = vsub.f32 %v1029, %v1030
        %v1032 = vand.u32 %v1031, 4294901760
        %1033 = vmatpush1.xpose.msra.mxu0 %v1032
        %1034 = vmatprep.subr.mxu0 0.0
        %v1035 = vand.u32 %v810, 4294901760
        %v1036 = vsub.f32 %v810, %v1035
        %v1037 = vand.u32 %v1036, 4294901760
        %v1038 = vsub.f32 %v1036, %v1037
        %v1039 = vand.u32 %v1038, 4294901760
        %1040 = vmatpush1.xpose.msra.mxu0 %v1039
        %1041 = vmatprep.subr.mxu0 0.0
        %v1042 = vand.u32 %v813, 4294901760
        %v1043 = vsub.f32 %v813, %v1042
        %v1044 = vand.u32 %v1043, 4294901760
        %v1045 = vsub.f32 %v1043, %v1044
        %v1046 = vand.u32 %v1045, 4294901760
        %1047 = vmatpush1.xpose.msra.mxu0 %v1046
        %1048 = vmatprep.subr.mxu0 0.0
        %1049 = vmatpush1.xpose.msra.mxu0 0.0
        %1050 = vmatprep.subr.mxu0 0.0
        %1051 = vmatpush1.xpose.msra.mxu0 0.0
        %1052 = vmatprep.subr.mxu0 0.0
        %1053 = vmatpush1.xpose.msra.mxu0 0.0
        %1054 = vmatprep.subr.mxu0 0.0
        %1055 = vmatpush1.xpose.msra.mxu0 0.0
        %1056 = vmatprep.subr.mxu0 0.0
        %1057 = vmatpush1.xpose.msra.mxu0 0.0
        %1058 = vmatprep.subr.mxu0 0.0
        %1059 = vmatpush1.xpose.msra.mxu0 0.0
        %1060 = vmatprep.subr.mxu0 0.0
        %1061 = vmatpush1.xpose.msra.mxu0 0.0
        %1062 = vmatprep.subr.mxu0 0.0
        %1063 = vmatpush1.xpose.msra.mxu0 0.0
        %1064 = vmatprep.subr.mxu0 0.0
        %1065 = vmatpush1.xpose.msra.mxu0 0.0
        %1066 = vmatprep.subr.mxu0 0.0
        %1067 = vmatpush1.xpose.msra.mxu0 0.0
        %1068 = vmatprep.subr.mxu0 0.0
        %1069 = vmatpush1.xpose.msra.mxu0 0.0
        %1070 = vmatprep.subr.mxu0 0.0
        %1071 = vmatpush1.xpose.msra.mxu0 0.0
        %1072 = vmatprep.subr.mxu0 0.0
        %1073 = vmatpush1.xpose.msra.mxu0 0.0
        %1074 = vmatprep.subr.mxu0 0.0
        %1075 = vmatpush1.xpose.msra.mxu0 0.0
        %1076 = vmatprep.subr.mxu0 0.0
        %1077 = vmatpush1.xpose.msra.mxu0 0.0
        %1078 = vmatprep.subr.mxu0 0.0
        %1079 = vmatpush1.xpose.msra.mxu0 0.0
        %1080 = vmatprep.mubr.f32.mxu0 0.0
        %v1081 = vand.u32 %v756, 4294901760
        %1082 = vmatmul.mubr.f32.gmra.mrb[0].mxu0 %v1081
        %v1083 = vpop.f32.mrb[0].mxu0
        %v1084 = vadd.f32 %v903, %v1083
        %v1085 = vpop.f32.mrb[0].mxu0
        %1086 = vmatprep.mubr.f32.mxu0 0.0
        %v1087 = vand.u32 %v759, 4294901760
        %1088 = vmatmul.mubr.f32.gmra.mrb[0].mxu0 %v1087
        %v1089 = vpop.f32.mrb[0].mxu0
        %v1090 = vadd.f32 %v913, %v1089
        %v1091 = vpop.f32.mrb[0].mxu0
        %1092 = vmatprep.mubr.f32.mxu0 0.0
        %v1093 = vand.u32 %v762, 4294901760
        %1094 = vmatmul.mubr.f32.gmra.mrb[0].mxu0 %v1093
        %v1095 = vpop.f32.mrb[0].mxu0
        %v1096 = vadd.f32 %v923, %v1095
        %v1097 = vpop.f32.mrb[0].mxu0
        %1098 = vmatprep.mubr.f32.mxu0 0.0
        %v1099 = vand.u32 %v765, 4294901760
        %1100 = vmatmul.mubr.f32.gmra.mrb[0].mxu0 %v1099
        %v1101 = vpop.f32.mrb[0].mxu0
        %v1102 = vadd.f32 %v933, %v1101
        %v1103 = vpop.f32.mrb[0].mxu0
        %1104 = vdwg.mxu0
        %1105 = vmatprep.subr.mxu0 0.0
        %v1106 = vand.u32 %v768, 4294901760
        %v1107 = vsub.f32 %v768, %v1106
        %1108 = vmatpush1.xpose.msra.mxu0 %v1107
        %1109 = vmatprep.subr.mxu0 0.0
        %v1110 = vand.u32 %v771, 4294901760
        %v1111 = vsub.f32 %v771, %v1110
        %1112 = vmatpush1.xpose.msra.mxu0 %v1111
        %1113 = vmatprep.subr.mxu0 0.0
        %v1114 = vand.u32 %v774, 4294901760
        %v1115 = vsub.f32 %v774, %v1114
        %1116 = vmatpush1.xpose.msra.mxu0 %v1115
        %1117 = vmatprep.subr.mxu0 0.0
        %v1118 = vand.u32 %v777, 4294901760
        %v1119 = vsub.f32 %v777, %v1118
        %1120 = vmatpush1.xpose.msra.mxu0 %v1119
        %1121 = vmatprep.subr.mxu0 0.0
        %v1122 = vand.u32 %v780, 4294901760
        %v1123 = vsub.f32 %v780, %v1122
        %1124 = vmatpush1.xpose.msra.mxu0 %v1123
        %1125 = vmatprep.subr.mxu0 0.0
        %v1126 = vand.u32 %v783, 4294901760
        %v1127 = vsub.f32 %v783, %v1126
        %1128 = vmatpush1.xpose.msra.mxu0 %v1127
        %1129 = vmatprep.subr.mxu0 0.0
        %v1130 = vand.u32 %v786, 4294901760
        %v1131 = vsub.f32 %v786, %v1130
        %1132 = vmatpush1.xpose.msra.mxu0 %v1131
        %1133 = vmatprep.subr.mxu0 0.0
        %v1134 = vand.u32 %v789, 4294901760
        %v1135 = vsub.f32 %v789, %v1134
        %1136 = vmatpush1.xpose.msra.mxu0 %v1135
        %1137 = vmatprep.subr.mxu0 0.0
        %v1138 = vand.u32 %v792, 4294901760
        %v1139 = vsub.f32 %v792, %v1138
        %1140 = vmatpush1.xpose.msra.mxu0 %v1139
        %1141 = vmatprep.subr.mxu0 0.0
        %v1142 = vand.u32 %v795, 4294901760
        %v1143 = vsub.f32 %v795, %v1142
        %1144 = vmatpush1.xpose.msra.mxu0 %v1143
        %1145 = vmatprep.subr.mxu0 0.0
        %v1146 = vand.u32 %v798, 4294901760
        %v1147 = vsub.f32 %v798, %v1146
        %1148 = vmatpush1.xpose.msra.mxu0 %v1147
        %1149 = vmatprep.subr.mxu0 0.0
        %v1150 = vand.u32 %v801, 4294901760
        %v1151 = vsub.f32 %v801, %v1150
        %1152 = vmatpush1.xpose.msra.mxu0 %v1151
        %1153 = vmatprep.subr.mxu0 0.0
        %v1154 = vand.u32 %v804, 4294901760
        %v1155 = vsub.f32 %v804, %v1154
        %1156 = vmatpush1.xpose.msra.mxu0 %v1155
        %1157 = vmatprep.subr.mxu0 0.0
        %v1158 = vand.u32 %v807, 4294901760
        %v1159 = vsub.f32 %v807, %v1158
        %1160 = vmatpush1.xpose.msra.mxu0 %v1159
        %1161 = vmatprep.subr.mxu0 0.0
        %v1162 = vand.u32 %v810, 4294901760
        %v1163 = vsub.f32 %v810, %v1162
        %1164 = vmatpush1.xpose.msra.mxu0 %v1163
        %1165 = vmatprep.subr.mxu0 0.0
        %v1166 = vand.u32 %v813, 4294901760
        %v1167 = vsub.f32 %v813, %v1166
        %1168 = vmatpush1.xpose.msra.mxu0 %v1167
        %1169 = vmatprep.subr.mxu0 0.0
        %1170 = vmatpush1.xpose.msra.mxu0 0.0
        %1171 = vmatprep.subr.mxu0 0.0
        %1172 = vmatpush1.xpose.msra.mxu0 0.0
        %1173 = vmatprep.subr.mxu0 0.0
        %1174 = vmatpush1.xpose.msra.mxu0 0.0
        %1175 = vmatprep.subr.mxu0 0.0
        %1176 = vmatpush1.xpose.msra.mxu0 0.0
        %1177 = vmatprep.subr.mxu0 0.0
        %1178 = vmatpush1.xpose.msra.mxu0 0.0
        %1179 = vmatprep.subr.mxu0 0.0
        %1180 = vmatpush1.xpose.msra.mxu0 0.0
        %1181 = vmatprep.subr.mxu0 0.0
        %1182 = vmatpush1.xpose.msra.mxu0 0.0
        %1183 = vmatprep.subr.mxu0 0.0
        %1184 = vmatpush1.xpose.msra.mxu0 0.0
        %1185 = vmatprep.subr.mxu0 0.0
        %1186 = vmatpush1.xpose.msra.mxu0 0.0
        %1187 = vmatprep.subr.mxu0 0.0
        %1188 = vmatpush1.xpose.msra.mxu0 0.0
        %1189 = vmatprep.subr.mxu0 0.0
        %1190 = vmatpush1.xpose.msra.mxu0 0.0
        %1191 = vmatprep.subr.mxu0 0.0
        %1192 = vmatpush1.xpose.msra.mxu0 0.0
        %1193 = vmatprep.subr.mxu0 0.0
        %1194 = vmatpush1.xpose.msra.mxu0 0.0
        %1195 = vmatprep.subr.mxu0 0.0
        %1196 = vmatpush1.xpose.msra.mxu0 0.0
        %1197 = vmatprep.subr.mxu0 0.0
        %1198 = vmatpush1.xpose.msra.mxu0 0.0
        %1199 = vmatprep.subr.mxu0 0.0
        %1200 = vmatpush1.xpose.msra.mxu0 0.0
        %1201 = vmatprep.mubr.f32.mxu0 0.0
        %v1202 = vand.u32 %v756, 4294901760
        %v1203 = vsub.f32 %v756, %v1202
        %1204 = vmatmul.mubr.f32.gmra.mrb[0].mxu0 %v1203
        %v1205 = vpop.f32.mrb[0].mxu0
        %v1206 = vadd.f32 %v1084, %v1205
        %v1207 = vpop.f32.mrb[0].mxu0
        %1208 = vmatprep.mubr.f32.mxu0 0.0
        %v1209 = vand.u32 %v759, 4294901760
        %v1210 = vsub.f32 %v759, %v1209
        %1211 = vmatmul.mubr.f32.gmra.mrb[0].mxu0 %v1210
        %v1212 = vpop.f32.mrb[0].mxu0
        %v1213 = vadd.f32 %v1090, %v1212
        %v1214 = vpop.f32.mrb[0].mxu0
        %1215 = vmatprep.mubr.f32.mxu0 0.0
        %v1216 = vand.u32 %v762, 4294901760
        %v1217 = vsub.f32 %v762, %v1216
        %1218 = vmatmul.mubr.f32.gmra.mrb[0].mxu0 %v1217
        %v1219 = vpop.f32.mrb[0].mxu0
        %v1220 = vadd.f32 %v1096, %v1219
        %v1221 = vpop.f32.mrb[0].mxu0
        %1222 = vmatprep.mubr.f32.mxu0 0.0
        %v1223 = vand.u32 %v765, 4294901760
        %v1224 = vsub.f32 %v765, %v1223
        %1225 = vmatmul.mubr.f32.gmra.mrb[0].mxu0 %v1224
        %v1226 = vpop.f32.mrb[0].mxu0
        %v1227 = vadd.f32 %v1102, %v1226
        %v1228 = vpop.f32.mrb[0].mxu0
        %1229 = vdwg.mxu0
        %1230 = vmatprep.subr.mxu0 0.0
        %v1231 = vand.u32 %v768, 4294901760
        %1232 = vmatpush1.xpose.msra.mxu0 %v1231
        %1233 = vmatprep.subr.mxu0 0.0
        %v1234 = vand.u32 %v771, 4294901760
        %1235 = vmatpush1.xpose.msra.mxu0 %v1234
        %1236 = vmatprep.subr.mxu0 0.0
        %v1237 = vand.u32 %v774, 4294901760
        %1238 = vmatpush1.xpose.msra.mxu0 %v1237
        %1239 = vmatprep.subr.mxu0 0.0
        %v1240 = vand.u32 %v777, 4294901760
        %1241 = vmatpush1.xpose.msra.mxu0 %v1240
        %1242 = vmatprep.subr.mxu0 0.0
        %v1243 = vand.u32 %v780, 4294901760
        %1244 = vmatpush1.xpose.msra.mxu0 %v1243
        %1245 = vmatprep.subr.mxu0 0.0
        %v1246 = vand.u32 %v783, 4294901760
        %1247 = vmatpush1.xpose.msra.mxu0 %v1246
        %1248 = vmatprep.subr.mxu0 0.0
        %v1249 = vand.u32 %v786, 4294901760
        %1250 = vmatpush1.xpose.msra.mxu0 %v1249
        %1251 = vmatprep.subr.mxu0 0.0
        %v1252 = vand.u32 %v789, 4294901760
        %1253 = vmatpush1.xpose.msra.mxu0 %v1252
        %1254 = vmatprep.subr.mxu0 0.0
        %v1255 = vand.u32 %v792, 4294901760
        %1256 = vmatpush1.xpose.msra.mxu0 %v1255
        %1257 = vmatprep.subr.mxu0 0.0
        %v1258 = vand.u32 %v795, 4294901760
        %1259 = vmatpush1.xpose.msra.mxu0 %v1258
        %1260 = vmatprep.subr.mxu0 0.0
        %v1261 = vand.u32 %v798, 4294901760
        %1262 = vmatpush1.xpose.msra.mxu0 %v1261
        %1263 = vmatprep.subr.mxu0 0.0
        %v1264 = vand.u32 %v801, 4294901760
        %1265 = vmatpush1.xpose.msra.mxu0 %v1264
        %1266 = vmatprep.subr.mxu0 0.0
        %v1267 = vand.u32 %v804, 4294901760
        %1268 = vmatpush1.xpose.msra.mxu0 %v1267
        %1269 = vmatprep.subr.mxu0 0.0
        %v1270 = vand.u32 %v807, 4294901760
        %1271 = vmatpush1.xpose.msra.mxu0 %v1270
        %1272 = vmatprep.subr.mxu0 0.0
        %v1273 = vand.u32 %v810, 4294901760
        %1274 = vmatpush1.xpose.msra.mxu0 %v1273
        %1275 = vmatprep.subr.mxu0 0.0
        %v1276 = vand.u32 %v813, 4294901760
        %1277 = vmatpush1.xpose.msra.mxu0 %v1276
        %1278 = vmatprep.subr.mxu0 0.0
        %1279 = vmatpush1.xpose.msra.mxu0 0.0
        %1280 = vmatprep.subr.mxu0 0.0
        %1281 = vmatpush1.xpose.msra.mxu0 0.0
        %1282 = vmatprep.subr.mxu0 0.0
        %1283 = vmatpush1.xpose.msra.mxu0 0.0
        %1284 = vmatprep.subr.mxu0 0.0
        %1285 = vmatpush1.xpose.msra.mxu0 0.0
        %1286 = vmatprep.subr.mxu0 0.0
        %1287 = vmatpush1.xpose.msra.mxu0 0.0
        %1288 = vmatprep.subr.mxu0 0.0
        %1289 = vmatpush1.xpose.msra.mxu0 0.0
        %1290 = vmatprep.subr.mxu0 0.0
        %1291 = vmatpush1.xpose.msra.mxu0 0.0
        %1292 = vmatprep.subr.mxu0 0.0
        %1293 = vmatpush1.xpose.msra.mxu0 0.0
        %1294 = vmatprep.subr.mxu0 0.0
        %1295 = vmatpush1.xpose.msra.mxu0 0.0
        %1296 = vmatprep.subr.mxu0 0.0
        %1297 = vmatpush1.xpose.msra.mxu0 0.0
        %1298 = vmatprep.subr.mxu0 0.0
        %1299 = vmatpush1.xpose.msra.mxu0 0.0
        %1300 = vmatprep.subr.mxu0 0.0
        %1301 = vmatpush1.xpose.msra.mxu0 0.0
        %1302 = vmatprep.subr.mxu0 0.0
        %1303 = vmatpush1.xpose.msra.mxu0 0.0
        %1304 = vmatprep.subr.mxu0 0.0
        %1305 = vmatpush1.xpose.msra.mxu0 0.0
        %1306 = vmatprep.subr.mxu0 0.0
        %1307 = vmatpush1.xpose.msra.mxu0 0.0
        %1308 = vmatprep.subr.mxu0 0.0
        %1309 = vmatpush1.xpose.msra.mxu0 0.0
        %1310 = vmatprep.mubr.f32.mxu0 0.0
        %v1311 = vand.u32 %v756, 4294901760
        %v1312 = vsub.f32 %v756, %v1311
        %v1313 = vand.u32 %v1312, 4294901760
        %1314 = vmatmul.mubr.f32.gmra.mrb[0].mxu0 %v1313
        %v1315 = vpop.f32.mrb[0].mxu0
        %v1316 = vadd.f32 %v1206, %v1315
        %v1317 = vpop.f32.mrb[0].mxu0
        %1318 = vmatprep.mubr.f32.mxu0 0.0
        %v1319 = vand.u32 %v759, 4294901760
        %v1320 = vsub.f32 %v759, %v1319
        %v1321 = vand.u32 %v1320, 4294901760
        %1322 = vmatmul.mubr.f32.gmra.mrb[0].mxu0 %v1321
        %v1323 = vpop.f32.mrb[0].mxu0
        %v1324 = vadd.f32 %v1213, %v1323
        %v1325 = vpop.f32.mrb[0].mxu0
        %1326 = vmatprep.mubr.f32.mxu0 0.0
        %v1327 = vand.u32 %v762, 4294901760
        %v1328 = vsub.f32 %v762, %v1327
        %v1329 = vand.u32 %v1328, 4294901760
        %1330 = vmatmul.mubr.f32.gmra.mrb[0].mxu0 %v1329
        %v1331 = vpop.f32.mrb[0].mxu0
        %v1332 = vadd.f32 %v1220, %v1331
        %v1333 = vpop.f32.mrb[0].mxu0
        %1334 = vmatprep.mubr.f32.mxu0 0.0
        %v1335 = vand.u32 %v765, 4294901760
        %v1336 = vsub.f32 %v765, %v1335
        %v1337 = vand.u32 %v1336, 4294901760
        %1338 = vmatmul.mubr.f32.gmra.mrb[0].mxu0 %v1337
        %v1339 = vpop.f32.mrb[0].mxu0
        %v1340 = vadd.f32 %v1227, %v1339
        %v1341 = vpop.f32.mrb[0].mxu0
        %1342 = vdwg.mxu0
        %1343 = vmatprep.subr.mxu0 0.0
        %v1344 = vand.u32 %v768, 4294901760
        %v1345 = vsub.f32 %v768, %v1344
        %v1346 = vand.u32 %v1345, 4294901760
        %1347 = vmatpush1.xpose.msra.mxu0 %v1346
        %1348 = vmatprep.subr.mxu0 0.0
        %v1349 = vand.u32 %v771, 4294901760
        %v1350 = vsub.f32 %v771, %v1349
        %v1351 = vand.u32 %v1350, 4294901760
        %1352 = vmatpush1.xpose.msra.mxu0 %v1351
        %1353 = vmatprep.subr.mxu0 0.0
        %v1354 = vand.u32 %v774, 4294901760
        %v1355 = vsub.f32 %v774, %v1354
        %v1356 = vand.u32 %v1355, 4294901760
        %1357 = vmatpush1.xpose.msra.mxu0 %v1356
        %1358 = vmatprep.subr.mxu0 0.0
        %v1359 = vand.u32 %v777, 4294901760
        %v1360 = vsub.f32 %v777, %v1359
        %v1361 = vand.u32 %v1360, 4294901760
        %1362 = vmatpush1.xpose.msra.mxu0 %v1361
        %1363 = vmatprep.subr.mxu0 0.0
        %v1364 = vand.u32 %v780, 4294901760
        %v1365 = vsub.f32 %v780, %v1364
        %v1366 = vand.u32 %v1365, 4294901760
        %1367 = vmatpush1.xpose.msra.mxu0 %v1366
        %1368 = vmatprep.subr.mxu0 0.0
        %v1369 = vand.u32 %v783, 4294901760
        %v1370 = vsub.f32 %v783, %v1369
        %v1371 = vand.u32 %v1370, 4294901760
        %1372 = vmatpush1.xpose.msra.mxu0 %v1371
        %1373 = vmatprep.subr.mxu0 0.0
        %v1374 = vand.u32 %v786, 4294901760
        %v1375 = vsub.f32 %v786, %v1374
        %v1376 = vand.u32 %v1375, 4294901760
        %1377 = vmatpush1.xpose.msra.mxu0 %v1376
        %1378 = vmatprep.subr.mxu0 0.0
        %v1379 = vand.u32 %v789, 4294901760
        %v1380 = vsub.f32 %v789, %v1379
        %v1381 = vand.u32 %v1380, 4294901760
        %1382 = vmatpush1.xpose.msra.mxu0 %v1381
        %1383 = vmatprep.subr.mxu0 0.0
        %v1384 = vand.u32 %v792, 4294901760
        %v1385 = vsub.f32 %v792, %v1384
        %v1386 = vand.u32 %v1385, 4294901760
        %1387 = vmatpush1.xpose.msra.mxu0 %v1386
        %1388 = vmatprep.subr.mxu0 0.0
        %v1389 = vand.u32 %v795, 4294901760
        %v1390 = vsub.f32 %v795, %v1389
        %v1391 = vand.u32 %v1390, 4294901760
        %1392 = vmatpush1.xpose.msra.mxu0 %v1391
        %1393 = vmatprep.subr.mxu0 0.0
        %v1394 = vand.u32 %v798, 4294901760
        %v1395 = vsub.f32 %v798, %v1394
        %v1396 = vand.u32 %v1395, 4294901760
        %1397 = vmatpush1.xpose.msra.mxu0 %v1396
        %1398 = vmatprep.subr.mxu0 0.0
        %v1399 = vand.u32 %v801, 4294901760
        %v1400 = vsub.f32 %v801, %v1399
        %v1401 = vand.u32 %v1400, 4294901760
        %1402 = vmatpush1.xpose.msra.mxu0 %v1401
        %1403 = vmatprep.subr.mxu0 0.0
        %v1404 = vand.u32 %v804, 4294901760
        %v1405 = vsub.f32 %v804, %v1404
        %v1406 = vand.u32 %v1405, 4294901760
        %1407 = vmatpush1.xpose.msra.mxu0 %v1406
        %1408 = vmatprep.subr.mxu0 0.0
        %v1409 = vand.u32 %v807, 4294901760
        %v1410 = vsub.f32 %v807, %v1409
        %v1411 = vand.u32 %v1410, 4294901760
        %1412 = vmatpush1.xpose.msra.mxu0 %v1411
        %1413 = vmatprep.subr.mxu0 0.0
        %v1414 = vand.u32 %v810, 4294901760
        %v1415 = vsub.f32 %v810, %v1414
        %v1416 = vand.u32 %v1415, 4294901760
        %1417 = vmatpush1.xpose.msra.mxu0 %v1416
        %1418 = vmatprep.subr.mxu0 0.0
        %v1419 = vand.u32 %v813, 4294901760
        %v1420 = vsub.f32 %v813, %v1419
        %v1421 = vand.u32 %v1420, 4294901760
        %1422 = vmatpush1.xpose.msra.mxu0 %v1421
        %1423 = vmatprep.subr.mxu0 0.0
        %1424 = vmatpush1.xpose.msra.mxu0 0.0
        %1425 = vmatprep.subr.mxu0 0.0
        %1426 = vmatpush1.xpose.msra.mxu0 0.0
        %1427 = vmatprep.subr.mxu0 0.0
        %1428 = vmatpush1.xpose.msra.mxu0 0.0
        %1429 = vmatprep.subr.mxu0 0.0
        %1430 = vmatpush1.xpose.msra.mxu0 0.0
        %1431 = vmatprep.subr.mxu0 0.0
        %1432 = vmatpush1.xpose.msra.mxu0 0.0
        %1433 = vmatprep.subr.mxu0 0.0
        %1434 = vmatpush1.xpose.msra.mxu0 0.0
        %1435 = vmatprep.subr.mxu0 0.0
        %1436 = vmatpush1.xpose.msra.mxu0 0.0
        %1437 = vmatprep.subr.mxu0 0.0
        %1438 = vmatpush1.xpose.msra.mxu0 0.0
        %1439 = vmatprep.subr.mxu0 0.0
        %1440 = vmatpush1.xpose.msra.mxu0 0.0
        %1441 = vmatprep.subr.mxu0 0.0
        %1442 = vmatpush1.xpose.msra.mxu0 0.0
        %1443 = vmatprep.subr.mxu0 0.0
        %1444 = vmatpush1.xpose.msra.mxu0 0.0
        %1445 = vmatprep.subr.mxu0 0.0
        %1446 = vmatpush1.xpose.msra.mxu0 0.0
        %1447 = vmatprep.subr.mxu0 0.0
        %1448 = vmatpush1.xpose.msra.mxu0 0.0
        %1449 = vmatprep.subr.mxu0 0.0
        %1450 = vmatpush1.xpose.msra.mxu0 0.0
        %1451 = vmatprep.subr.mxu0 0.0
        %1452 = vmatpush1.xpose.msra.mxu0 0.0
        %1453 = vmatprep.subr.mxu0 0.0
        %1454 = vmatpush1.xpose.msra.mxu0 0.0
        %1455 = vmatprep.mubr.f32.mxu0 0.0
        %v1456 = vand.u32 %v756, 4294901760
        %1457 = vmatmul.mubr.f32.gmra.mrb[0].mxu0 %v1456
        %v1458 = vpop.f32.mrb[0].mxu0
        %v1459 = vadd.f32 %v1316, %v1458
        %v1460 = vpop.f32.mrb[0].mxu0
        %1461 = vmatprep.mubr.f32.mxu0 0.0
        %v1462 = vand.u32 %v759, 4294901760
        %1463 = vmatmul.mubr.f32.gmra.mrb[0].mxu0 %v1462
        %v1464 = vpop.f32.mrb[0].mxu0
        %v1465 = vadd.f32 %v1324, %v1464
        %v1466 = vpop.f32.mrb[0].mxu0
        %1467 = vmatprep.mubr.f32.mxu0 0.0
        %v1468 = vand.u32 %v762, 4294901760
        %1469 = vmatmul.mubr.f32.gmra.mrb[0].mxu0 %v1468
        %v1470 = vpop.f32.mrb[0].mxu0
        %v1471 = vadd.f32 %v1332, %v1470
        %v1472 = vpop.f32.mrb[0].mxu0
        %1473 = vmatprep.mubr.f32.mxu0 0.0
        %v1474 = vand.u32 %v765, 4294901760
        %1475 = vmatmul.mubr.f32.gmra.mrb[0].mxu0 %v1474
        %v1476 = vpop.f32.mrb[0].mxu0
        %v1477 = vadd.f32 %v1340, %v1476
        %v1478 = vpop.f32.mrb[0].mxu0
        %1479 = vdwg.mxu0
        %1480 = vmatprep.subr.mxu0 0.0
        %v1481 = vand.u32 %v768, 4294901760
        %1482 = vmatpush1.xpose.msra.mxu0 %v1481
        %1483 = vmatprep.subr.mxu0 0.0
        %v1484 = vand.u32 %v771, 4294901760
        %1485 = vmatpush1.xpose.msra.mxu0 %v1484
        %1486 = vmatprep.subr.mxu0 0.0
        %v1487 = vand.u32 %v774, 4294901760
        %1488 = vmatpush1.xpose.msra.mxu0 %v1487
        %1489 = vmatprep.subr.mxu0 0.0
        %v1490 = vand.u32 %v777, 4294901760
        %1491 = vmatpush1.xpose.msra.mxu0 %v1490
        %1492 = vmatprep.subr.mxu0 0.0
        %v1493 = vand.u32 %v780, 4294901760
        %1494 = vmatpush1.xpose.msra.mxu0 %v1493
        %1495 = vmatprep.subr.mxu0 0.0
        %v1496 = vand.u32 %v783, 4294901760
        %1497 = vmatpush1.xpose.msra.mxu0 %v1496
        %1498 = vmatprep.subr.mxu0 0.0
        %v1499 = vand.u32 %v786, 4294901760
        %1500 = vmatpush1.xpose.msra.mxu0 %v1499
        %1501 = vmatprep.subr.mxu0 0.0
        %v1502 = vand.u32 %v789, 4294901760
        %1503 = vmatpush1.xpose.msra.mxu0 %v1502
        %1504 = vmatprep.subr.mxu0 0.0
        %v1505 = vand.u32 %v792, 4294901760
        %1506 = vmatpush1.xpose.msra.mxu0 %v1505
        %1507 = vmatprep.subr.mxu0 0.0
        %v1508 = vand.u32 %v795, 4294901760
        %1509 = vmatpush1.xpose.msra.mxu0 %v1508
        %1510 = vmatprep.subr.mxu0 0.0
        %v1511 = vand.u32 %v798, 4294901760
        %1512 = vmatpush1.xpose.msra.mxu0 %v1511
        %1513 = vmatprep.subr.mxu0 0.0
        %v1514 = vand.u32 %v801, 4294901760
        %1515 = vmatpush1.xpose.msra.mxu0 %v1514
        %1516 = vmatprep.subr.mxu0 0.0
        %v1517 = vand.u32 %v804, 4294901760
        %1518 = vmatpush1.xpose.msra.mxu0 %v1517
        %1519 = vmatprep.subr.mxu0 0.0
        %v1520 = vand.u32 %v807, 4294901760
        %1521 = vmatpush1.xpose.msra.mxu0 %v1520
        %1522 = vmatprep.subr.mxu0 0.0
        %v1523 = vand.u32 %v810, 4294901760
        %1524 = vmatpush1.xpose.msra.mxu0 %v1523
        %1525 = vmatprep.subr.mxu0 0.0
        %v1526 = vand.u32 %v813, 4294901760
        %1527 = vmatpush1.xpose.msra.mxu0 %v1526
        %1528 = vmatprep.subr.mxu0 0.0
        %1529 = vmatpush1.xpose.msra.mxu0 0.0
        %1530 = vmatprep.subr.mxu0 0.0
        %1531 = vmatpush1.xpose.msra.mxu0 0.0
        %1532 = vmatprep.subr.mxu0 0.0
        %1533 = vmatpush1.xpose.msra.mxu0 0.0
        %1534 = vmatprep.subr.mxu0 0.0
        %1535 = vmatpush1.xpose.msra.mxu0 0.0
        %1536 = vmatprep.subr.mxu0 0.0
        %1537 = vmatpush1.xpose.msra.mxu0 0.0
        %1538 = vmatprep.subr.mxu0 0.0
        %1539 = vmatpush1.xpose.msra.mxu0 0.0
        %1540 = vmatprep.subr.mxu0 0.0
        %1541 = vmatpush1.xpose.msra.mxu0 0.0
        %1542 = vmatprep.subr.mxu0 0.0
        %1543 = vmatpush1.xpose.msra.mxu0 0.0
        %1544 = vmatprep.subr.mxu0 0.0
        %1545 = vmatpush1.xpose.msra.mxu0 0.0
        %1546 = vmatprep.subr.mxu0 0.0
        %1547 = vmatpush1.xpose.msra.mxu0 0.0
        %1548 = vmatprep.subr.mxu0 0.0
        %1549 = vmatpush1.xpose.msra.mxu0 0.0
        %1550 = vmatprep.subr.mxu0 0.0
        %1551 = vmatpush1.xpose.msra.mxu0 0.0
        %1552 = vmatprep.subr.mxu0 0.0
        %1553 = vmatpush1.xpose.msra.mxu0 0.0
        %1554 = vmatprep.subr.mxu0 0.0
        %1555 = vmatpush1.xpose.msra.mxu0 0.0
        %1556 = vmatprep.subr.mxu0 0.0
        %1557 = vmatpush1.xpose.msra.mxu0 0.0
        %1558 = vmatprep.subr.mxu0 0.0
        %1559 = vmatpush1.xpose.msra.mxu0 0.0
        %1560 = vmatprep.mubr.f32.mxu0 0.0
        %v1561 = vand.u32 %v756, 4294901760
        %1562 = vmatmul.mubr.f32.gmra.mrb[0].mxu0 %v1561
        %v1563 = vpop.f32.mrb[0].mxu0
        %v1564 = vadd.f32 %v1459, %v1563
        %v1565 = vpop.f32.mrb[0].mxu0
        %1566 = vmatprep.mubr.f32.mxu0 0.0
        %v1567 = vand.u32 %v759, 4294901760
        %1568 = vmatmul.mubr.f32.gmra.mrb[0].mxu0 %v1567
        %v1569 = vpop.f32.mrb[0].mxu0
        %v1570 = vadd.f32 %v1465, %v1569
        %v1571 = vpop.f32.mrb[0].mxu0
        %1572 = vmatprep.mubr.f32.mxu0 0.0
        %v1573 = vand.u32 %v762, 4294901760
        %1574 = vmatmul.mubr.f32.gmra.mrb[0].mxu0 %v1573
        %v1575 = vpop.f32.mrb[0].mxu0
        %v1576 = vadd.f32 %v1471, %v1575
        %v1577 = vpop.f32.mrb[0].mxu0
        %1578 = vmatprep.mubr.f32.mxu0 0.0
        %v1579 = vand.u32 %v765, 4294901760
        %1580 = vmatmul.mubr.f32.gmra.mrb[0].mxu0 %v1579
        %v1581 = vpop.f32.mrb[0].mxu0
        %v1582 = vadd.f32 %v1477, %v1581
        %v1583 = vpop.f32.mrb[0].mxu0
        %1584 = vdwg.mxu0
        %v1585 = vmax.f32 %v1564, 0.0
        %v1586 = vmax.f32 %v1570, 0.0
        %v1587 = vmax.f32 %v1576, 0.0
        %v1588 = vmax.f32 %v1582, 0.0
        %1589 = vst [vmem:[%s200] sm:$0xff] %v1585
        %1590 = vst [vmem:[%s200 + $0x8] sm:$0xff] %v1586
        %1591 = vst [vmem:[%s200 + $0x10] sm:$0xff] %v1587
        %1592 = vst [vmem:[%s200 + $0x18] sm:$0xff] %v1588
        %s1593 = sand.u32 %s126, 1
        %s1594 = sand.u32 %s126, 1
        %s1595 = smul.addr %s1594, 32
        %s1596 = scalar_lea.vmem [#allocation2], %s1595
        // Predicated region
        $region37: #{depth_separable_conv.1} parent=35 // pred_check
          %p1597 = pneg %p136
        $region38: #{depth_separable_conv.1} parent=35 // pred_check_branch
          %1599 = sbr.rel (%p1597) target = $region40
        $region39: #{depth_separable_conv.1} parent=35 // pred_region
          %s1600 = smul.addr %s19, 8
          %s1601 = sadd.s32 %s20, %s1600
          %s1602 = smul.addr %s1601, 8
          %s1603 = scalar_lea.vmem %s4, %s1602
          // Predicated region
          $region41: #{depth_separable_conv.1} parent=39 // pred_check
            _
          $region42: #{depth_separable_conv.1} parent=39 // pred_check_branch
            %1605 = sbr.rel (0) target = $region44
          $region43: #{depth_separable_conv.1} parent=39 // pred_region
            // Predicated region
            $region45: #{depth_separable_conv.1} parent=43 // pred_check
              _
            $region46: #{depth_separable_conv.1} parent=43 // pred_check_branch
              %1607 = sbr.rel (0) target = $region48
            $region47: #{depth_separable_conv.1} parent=43 // pred_region
              // Predicated region
              $region60: #{depth_separable_conv.1} parent=47 // pred_check
                _
              $region61: #{depth_separable_conv.1} parent=47 // pred_check_branch
                %1628 = sbr.rel (0) target = $region63
              $region62: #{depth_separable_conv.1} parent=47 // pred_region
                loop: start=0, step=1, limit=1
                $region64: #{depth_separable_conv.1} parent=62 // loop_pre_header
                  _
                $region65: #{depth_separable_conv.1} parent=62 // loop_header
                  %s1630 = sphi 0, %s1634
                  %p1631 = scmp.ge.s32.totalorder %s1630, 1
                  %s1635 = sphi %s1596, %s1596
                  %s1636 = sphi %s1603, %s1603
                $region66: #{depth_separable_conv.1} parent=62 // loop_header_branch
                  %1633 = sbr.rel (%p1631) target = $region70
                $region67: #{depth_separable_conv.1} parent=62 // loop_body
                  %v1637 = vld [vmem:[%s1635] sm:$0xff]
                  %1638 = vst [vmem:[%s1636] sm:$0xff] %v1637
                  %v1639 = vld [vmem:[%s1635 + $0x8] sm:$0xff]
                  %1640 = vst [vmem:[%s1636 + $0x10] sm:$0xff] %v1639
                  %v1641 = vld [vmem:[%s1635 + $0x10] sm:$0xff]
                  %1642 = vst [vmem:[%s1636 + $0x20] sm:$0xff] %v1641
                  %v1643 = vld [vmem:[%s1635 + $0x18] sm:$0xff]
                  %1644 = vst [vmem:[%s1636 + $0x30] sm:$0xff] %v1643
                $region68: #{depth_separable_conv.1} parent=62 // loop_footer
                  %s1634 = sadd.s32 1, %s1630
                $region69: #{depth_separable_conv.1} parent=62 // loop_footer_branch
                  %1629 = sbr.rel target = $region65
                $region70: #{depth_separable_conv.1} parent=62 // loop_exit
                  _
              $region63: #{depth_separable_conv.1} parent=47 // pred_fallthru
                _
              // Predicated region
              $region71: #{depth_separable_conv.1} parent=47 // pred_check
                _
              $region72: #{depth_separable_conv.1} parent=47 // pred_check_branch
                %1646 = sbr.rel target = $region74
              $region73: #{depth_separable_conv.1} parent=47 // pred_region
                _
              $region74: #{depth_separable_conv.1} parent=47 // pred_fallthru
                _
            $region48: #{depth_separable_conv.1} parent=43 // pred_fallthru
              _
            // Predicated region
            $region49: #{depth_separable_conv.1} parent=43 // pred_check
              _
            $region50: #{depth_separable_conv.1} parent=43 // pred_check_branch
              %1609 = sbr.rel target = $region52
            $region51: #{depth_separable_conv.1} parent=43 // pred_region
              loop: start=0, step=1, limit=1
              $region53: #{depth_separable_conv.1} parent=51 // loop_pre_header
                _
              $region54: #{depth_separable_conv.1} parent=51 // loop_header
                %s1612 = sphi 0, %s1616
                %p1613 = scmp.ge.s32.totalorder %s1612, 1
                %s1617 = sphi %s1596, %s1596
                %s1618 = sphi %s1603, %s1603
              $region55: #{depth_separable_conv.1} parent=51 // loop_header_branch
                %1615 = sbr.rel (%p1613) target = $region59
              $region56: #{depth_separable_conv.1} parent=51 // loop_body
                %v1619 = vld [vmem:[%s1617] sm:$0xff]
                %1620 = vst [vmem:[%s1618] sm:$0xff] %v1619
                %v1621 = vld [vmem:[%s1617 + $0x8] sm:$0xff]
                %1622 = vst [vmem:[%s1618 + $0x10] sm:$0xff] %v1621
                %v1623 = vld [vmem:[%s1617 + $0x10] sm:$0xff]
                %1624 = vst [vmem:[%s1618 + $0x20] sm:$0xff] %v1623
                %v1625 = vld [vmem:[%s1617 + $0x18] sm:$0xff]
                %1626 = vst [vmem:[%s1618 + $0x30] sm:$0xff] %v1625
              $region57: #{depth_separable_conv.1} parent=51 // loop_footer
                %s1616 = sadd.s32 1, %s1612
              $region58: #{depth_separable_conv.1} parent=51 // loop_footer_branch
                %1611 = sbr.rel target = $region54
              $region59: #{depth_separable_conv.1} parent=51 // loop_exit
                _
            $region52: #{depth_separable_conv.1} parent=43 // pred_fallthru
              _
          $region44: #{depth_separable_conv.1} parent=39 // pred_fallthru
            _
          %1647 = vnop
        $region40: #{depth_separable_conv.1} parent=35 // pred_fallthru
          _
      $region36: #{depth_separable_conv.1} parent=5 // pred_fallthru
        _
      %p1648 = scmp.le.s32.totalorder 2, %s10
      // Predicated region
      $region75: #{depth_separable_conv.1} parent=5 // pred_check
        %p1649 = pneg %p1648
      $region76: #{depth_separable_conv.1} parent=5 // pred_check_branch
        %1651 = sbr.rel (%p1649) target = $region78
      $region77: #{depth_separable_conv.1} parent=5 // pred_region
        %s1652 = ssub.s32 %s10, 2
        // Predicated region
        $region79: #{depth_separable_conv.1} parent=77 // pred_check
          %p1653 = pneg %p142
        $region80: #{depth_separable_conv.1} parent=77 // pred_check_branch
          %1655 = sbr.rel (%p1653) target = $region82
        $region81: #{depth_separable_conv.1} parent=77 // pred_region
          %s1656 = sand.u32 %s127, 1
          %s1657 = sand.u32 %s127, 1
          %s1658 = smul.addr %s1657, 32
          %s1659 = scalar_lea.vmem [#allocation2], %s1658
        $region82: #{depth_separable_conv.1} parent=77 // pred_fallthru
          _
      $region78: #{depth_separable_conv.1} parent=5 // pred_fallthru
        _
    $region6: #{depth_separable_conv.1} parent=1 // loop_footer
      %s14 = sadd.s32 1, %s10
    $region7: #{depth_separable_conv.1} parent=1 // loop_footer_branch
      %9 = sbr.rel target = $region3
    $region8: #{depth_separable_conv.1} parent=1 // loop_exit
      _

</llo_original>
